<compile_context>
chip_gen: v5e
topology: v5e:2x2
jax: 0.10.0
libtpu: 0.0.40
codegen_flags: <defaults>
</compile_context>

<pallas_src>
import functools

import numpy as np
import jax
import jax.numpy as jnp
from jax import lax
from jax.experimental import pallas as pl
from jax.experimental.pallas import tpu as pltpu


def _make_divisible(v, divisor, min_value=None):
    if min_value is None:
        min_value = divisor
    new_v = max(min_value, int(v + divisor / 2) // divisor * divisor)
    if new_v < 0.9 * v:
        new_v += divisor
    return new_v


def _mbconv_kernel(W, HW, Bt,
                   x_ref, w1_ref, w3_ref, f1w_ref, f2w_ref, prm_ref, lanec_ref,
                   o_ref):
    N = Bt * HW
    Hd = w1_ref.shape[0]
    SE = f1w_ref.shape[0]
    Cout = w3_ref.shape[0]

    x = x_ref[...]                                     # (Cin, N) f32, pixels on lanes

    # Packed per-channel params: cols 0-8 depthwise weights (bn2_s folded),
    # 9 bn1_b, 10 bn2_b, 11 SE fc2 bias, 12 bn3_b, 13 SE fc1 bias.
    prm = prm_ref[...]
    wd = prm[:Hd, 0:9]
    bn1b = prm[:Hd, 9:10]
    bn2b = prm[:Hd, 10:11]
    f2b = prm[:Hd, 11:12]
    bn3b = prm[:Cout, 12:13]
    f1b = prm[:SE, 13:14]

    # Lane constants: rows 0-7 depthwise boundary masks (tap order, center skipped),
    # rows 8.. per-image 0/1 pooling selector E (zero-padded to >= 8 rows).
    lanec = lanec_ref[...]
    E = lanec[8:]                                      # (Ecols, N)

    # --- 1x1 expand conv (MXU, bn1_s folded into weights) + bias + SiLU ----------
    w1 = w1_ref[...]                                   # (Hd, Cin)
    h1 = jnp.dot(w1, x.astype(w1.dtype), preferred_element_type=jnp.float32) + bn1b
    h1 = h1 * jax.nn.sigmoid(h1)                       # (Hd, N)

    # --- 3x3 depthwise conv, stride 1, zero padding 1 (bn2_s folded into wd) -----
    # Each non-center tap = lane rotation of the folded-pixel axis * precomputed
    # boundary mask (also zeroes cross-image wrap) * per-channel weight column.
    acc = h1 * wd[:, 4:5]                              # center tap: no shift, no mask
    mi = 0
    for k in range(9):                                 # static unroll
        dh, dw = k // 3 - 1, k % 3 - 1
        if dh == 0 and dw == 0:
            continue
        off = dh * W + dw                              # flat source-pixel offset
        tap = pltpu.roll(h1, (-off) % N, 1) * lanec[mi:mi + 1]
        acc = acc + tap * wd[:, k:k + 1]
        mi += 1
    h2 = acc + bn2b
    h2 = h2 * jax.nn.sigmoid(h2)                       # (Hd, N)

    # --- Squeeze-and-Excite (per image) -------------------------------------------
    # Per-image sum-pool as an MXU dot against the 0/1 selector (1/HW is folded
    # into f1w in the wrapper).  SE math stays f32 regardless of matmul_dtype.
    pool = lax.dot_general(h2, E, (((1,), (1,)), ((), ())),
                           preferred_element_type=jnp.float32)      # (Hd, Ecols)
    y1 = jnp.dot(f1w_ref[...], pool, preferred_element_type=jnp.float32) + f1b
    y1 = y1 * jax.nn.sigmoid(y1)                                    # (SE, Ecols)
    y2 = jax.nn.sigmoid(jnp.dot(f2w_ref[...], y1,
                                preferred_element_type=jnp.float32) + f2b)  # (Hd, Ecols)
    if Bt == 1:
        h3 = h2 * y2[:, 0:1]                           # plain lane broadcast
    else:
        scale = y2[:, 0:1] * E[0:1, :]                 # tiny unrolled outer-product sum
        for b in range(1, Bt):
            scale = scale + y2[:, b:b + 1] * E[b:b + 1, :]
        h3 = h2 * scale

    # --- 1x1 project conv (MXU, bn3_s folded) + bias + identity residual ---------
    w3 = w3_ref[...]                                   # (Cout, Hd)
    out = jnp.dot(w3, h3.astype(w3.dtype), preferred_element_type=jnp.float32)
    out = out + bn3b + x                               # identity (stride=1, Cin==Cout)
    o_ref[...] = out.astype(o_ref.dtype)               # lane-dense (Cout, N) store


def mbconv_forward(x_nchw, p, *, matmul_dtype=jnp.float32, batch_tile=None,
                   min_grid_steps=4, max_block_lanes=8192):
    """x_nchw: (B, Cin, H, W) float32. Returns (B, Cout, H, W) float32."""
    B, Cin, H, W = x_nchw.shape
    Hd = p["w1"].shape[1]
    SE = p["f1w"].shape[1]
    Cout = p["w3"].shape[1]
    assert Cin == Cout, "identity path requires inp == oup"
    HW = H * W
    f32 = jnp.float32

    # --- batch tile: fold Bt images into the matmul N dim, keep >=min_grid_steps ---
    if batch_tile is None:
        Bt = 1
        for d in range(1, B + 1):
            if B % d == 0 and B // d >= min_grid_steps and d * HW <= max_block_lanes:
                Bt = d
    else:
        Bt = batch_tile
    assert B % Bt == 0
    N = Bt * HW
    steps = B // Bt

    # --- activations: (B,Cin,H,W) -> (Cin, B*HW); one tiny HBM transpose ----------
    x = jnp.transpose(x_nchw.reshape(B, Cin, HW).astype(f32), (1, 0, 2)).reshape(Cin, B * HW)

    # --- fold BN scales into the conv weights (wrapper-time, free) ----------------
    bn1_s = p["bn1_s"].reshape(Hd, 1)
    bn2_s = p["bn2_s"].reshape(Hd, 1)
    bn3_s = p["bn3_s"].reshape(Cout, 1)
    w1t = (p["w1"].T * bn1_s).astype(matmul_dtype)              # (Hd, Cin)
    w3t = (p["w3"].T * bn3_s).astype(matmul_dtype)              # (Cout, Hd)
    wdt = (p["wd"].reshape(9, Hd).T * bn2_s).astype(f32)        # (Hd, 9)
    f1wt = (p["f1w"].T / HW).astype(f32)                        # (SE, Hd), 1/HW folded
    f2wt = p["f2w"].T.astype(f32)                               # (Hd, SE)

    # --- pack all per-channel vectors + depthwise weights into one array ----------
    Prow = max(Hd, Cout, SE)

    def pad_rows(a):
        return jnp.pad(a.astype(f32), ((0, Prow - a.shape[0]), (0, 0)))

    prm = jnp.concatenate([
        pad_rows(wdt),                                  # cols 0..8
        pad_rows(p["bn1_b"].reshape(Hd, 1)),            # col 9
        pad_rows(p["bn2_b"].reshape(Hd, 1)),            # col 10
        pad_rows(p["f2b"].reshape(Hd, 1)),              # col 11
        pad_rows(p["bn3_b"].reshape(Cout, 1)),          # col 12
        pad_rows(p["f1b"].reshape(SE, 1)),              # col 13
    ], axis=1)                                          # (Prow, 14)

    # --- precompute lane constants: 8 boundary masks + per-image pool selector ----
    pix = np.arange(HW)
    hi, wi = pix // W, pix % W
    rows = []
    for k in range(9):
        dh, dw = k // 3 - 1, k % 3 - 1
        if dh == 0 and dw == 0:
            continue
        ok = ((hi + dh >= 0) & (hi + dh < H) &
              (wi + dw >= 0) & (wi + dw < W)).astype(np.float32)
        rows.append(np.tile(ok, Bt))
    Ecols = max(Bt, 8)                                  # keep SE matmul N >= 8
    eb = np.zeros((Ecols, N), np.float32)
    for b in range(Bt):
        eb[b, b * HW:(b + 1) * HW] = 1.0
    lanec = jnp.asarray(np.concatenate([np.stack(rows), eb], axis=0))  # (8+Ecols, N)

    kernel = functools.partial(_mbconv_kernel, W, HW, Bt)

    out_flat = pl.pallas_call(
        kernel,
        out_shape=jax.ShapeDtypeStruct((Cout, B * HW), jnp.float32),
        grid_spec=pltpu.PrefetchScalarGridSpec(
            num_scalar_prefetch=0,
            grid=(steps,),
            in_specs=[
                pl.BlockSpec((Cin, N), lambda b: (0, b)),          # x (lane-dense)
                pl.BlockSpec((Hd, Cin), lambda b: (0, 0)),         # w1^T (bn1_s folded)
                pl.BlockSpec((Cout, Hd), lambda b: (0, 0)),        # w3^T (bn3_s folded)
                pl.BlockSpec((SE, Hd), lambda b: (0, 0)),          # SE fc1 w^T (1/HW folded)
                pl.BlockSpec((Hd, SE), lambda b: (0, 0)),          # SE fc2 w^T
                pl.BlockSpec((Prow, 14), lambda b: (0, 0)),        # packed per-channel params
                pl.BlockSpec((8 + Ecols, N), lambda b: (0, 0)),    # masks + pool selector
            ],
            out_specs=pl.BlockSpec((Cout, N), lambda b: (0, b)),   # lane-dense store
        ),
        compiler_params=pltpu.CompilerParams(
            dimension_semantics=("parallel",),
            vmem_limit_bytes=32 * 1024 * 1024,
        ),
    )(x, w1t, w3t, f1wt, f2wt, prm, lanec)

    out = jnp.transpose(out_flat.reshape(Cout, B, HW), (1, 0, 2)).reshape(B, Cout, H, W)
    return out


def mbconv_reference(x_nchw, p):
    """Pure-JAX reference (no Pallas) mirroring the PyTorch forward (BN eval mode)."""
    x = jnp.transpose(x_nchw, (0, 2, 3, 1))
    Hd = p["w1"].shape[1]

    h = jnp.einsum("bhwc,cd->bhwd", x, p["w1"])
    h = h * p["bn1_s"] + p["bn1_b"]
    h = h * jax.nn.sigmoid(h)

    dw = p["wd"].reshape(3, 3, 1, Hd)                 # HWIO, groups = Hd
    h2 = lax.conv_general_dilated(
        h, dw, window_strides=(1, 1), padding="SAME",
        dimension_numbers=("NHWC", "HWIO", "NHWC"), feature_group_count=Hd)
    h2 = h2 * p["bn2_s"] + p["bn2_b"]
    h2 = h2 * jax.nn.sigmoid(h2)

    pool = jnp.mean(h2, axis=(1, 2))                  # (B, Hd)
    y1 = pool @ p["f1w"] + p["f1b"]
    y1 = y1 * jax.nn.sigmoid(y1)
    y2 = jax.nn.sigmoid(y1 @ p["f2w"] + p["f2b"])
    h3 = h2 * y2[:, None, None, :]

    out = jnp.einsum("bhwc,cd->bhwd", h3, p["w3"])
    out = out * p["bn3_s"] + p["bn3_b"]
    out = out + x
    return jnp.transpose(out, (0, 3, 1, 2))


def init_params(key, inp, oup, expand_ratio, eps=1e-5):
    hidden = int(round(inp * expand_ratio))
    se = _make_divisible(inp // 4, 8)
    ks = jax.random.split(key, 20)

    def bn_fold(kg, kb, km, kv, c):
        gamma = 1.0 + 0.1 * jax.random.normal(kg, (1, c), jnp.float32)
        beta = 0.1 * jax.random.normal(kb, (1, c), jnp.float32)
        mean = 0.1 * jax.random.normal(km, (1, c), jnp.float32)
        var = 1.0 + 0.5 * jax.random.uniform(kv, (1, c), jnp.float32)
        scale = gamma / jnp.sqrt(var + eps)
        bias = beta - mean * scale
        return scale, bias

    w1 = 0.3 * jax.random.normal(ks[0], (inp, hidden), jnp.float32)
    bn1_s, bn1_b = bn_fold(ks[1], ks[2], ks[3], ks[4], hidden)
    wd = 0.3 * jax.random.normal(ks[5], (3, 3, hidden), jnp.float32)
    bn2_s, bn2_b = bn_fold(ks[6], ks[7], ks[8], ks[9], hidden)
    f1w = 0.3 * jax.random.normal(ks[10], (hidden, se), jnp.float32)
    f1b = 0.1 * jax.random.normal(ks[11], (1, se), jnp.float32)
    f2w = 0.3 * jax.random.normal(ks[12], (se, hidden), jnp.float32)
    f2b = 0.1 * jax.random.normal(ks[13], (1, hidden), jnp.float32)
    w3 = 0.3 * jax.random.normal(ks[14], (hidden, oup), jnp.float32)
    bn3_s, bn3_b = bn_fold(ks[15], ks[16], ks[17], ks[18], oup)

    return dict(w1=w1, bn1_s=bn1_s, bn1_b=bn1_b,
                wd=wd, bn2_s=bn2_s, bn2_b=bn2_b,
                f1w=f1w, f1b=f1b, f2w=f2w, f2b=f2b,
                w3=w3, bn3_s=bn3_s, bn3_b=bn3_b)


if __name__ == "__main__":
    B, Cin, H, W = 8, 8, 16, 16          # Bt=2 -> grid of 4 steps (>=2 per v7x core)
    expand_ratio = 4
    oup = Cin                            # stride=1 and inp == oup -> identity residual

    key = jax.random.PRNGKey(0)
    kx, kp = jax.random.split(key)
    x = jax.random.normal(kx, (B, Cin, H, W), dtype=jnp.float32)
    params = init_params(kp, Cin, oup, expand_ratio)

    out = mbconv_forward(x, params)      # f32 matmul operands -> tight tolerance
    out = jax.block_until_ready(out)

    ref = mbconv_reference(x, params)
    np.testing.assert_allclose(np.asarray(out), np.asarray(ref), rtol=1e-4, atol=1e-4)

    print("KERNEL_OK")
</pallas_src>

<mosaic_0001>
module attributes {stable_mosaic.version = 11 : i64} {
  func.func @_mbconv_kernel(%arg0: i32, %arg1: memref<8x512xf32, #tpu.memory_space<vmem>>, %arg2: memref<32x8xf32, #tpu.memory_space<vmem>>, %arg3: memref<8x32xf32, #tpu.memory_space<vmem>>, %arg4: memref<8x32xf32, #tpu.memory_space<vmem>>, %arg5: memref<32x8xf32, #tpu.memory_space<vmem>>, %arg6: memref<32x14xf32, #tpu.memory_space<vmem>>, %arg7: memref<16x512xf32, #tpu.memory_space<vmem>>, %arg8: memref<8x512xf32, #tpu.memory_space<vmem>>) attributes {dimension_semantics = [#tpu.dimension_semantics<parallel>], iteration_bounds = array<i64: 4>, scalar_prefetch = 0 : i64, scratch_operands = 0 : i64, tpu.core_type = #tpu.core_type<tc>, window_params = [{transform_indices = @transform_0, window_bounds = array<i64: 8, 512>}, {pipeline_mode = #tpu.pipeline_mode<synchronous>, transform_indices = @transform_1, window_bounds = array<i64: 32, 8>}, {pipeline_mode = #tpu.pipeline_mode<synchronous>, transform_indices = @transform_2, window_bounds = array<i64: 8, 32>}, {pipeline_mode = #tpu.pipeline_mode<synchronous>, transform_indices = @transform_3, window_bounds = array<i64: 8, 32>}, {pipeline_mode = #tpu.pipeline_mode<synchronous>, transform_indices = @transform_4, window_bounds = array<i64: 32, 8>}, {pipeline_mode = #tpu.pipeline_mode<synchronous>, transform_indices = @transform_5, window_bounds = array<i64: 32, 14>}, {pipeline_mode = #tpu.pipeline_mode<synchronous>, transform_indices = @transform_6, window_bounds = array<i64: 16, 512>}, {transform_indices = @transform_7, window_bounds = array<i64: 8, 512>}]} {
    %c0 = arith.constant 0 : index
    %c0_0 = arith.constant 0 : index
    %0 = vector.load %arg1[%c0, %c0_0] : memref<8x512xf32, #tpu.memory_space<vmem>>, vector<8x512xf32>
    %c0_1 = arith.constant 0 : index
    %c0_2 = arith.constant 0 : index
    %1 = vector.load %arg6[%c0_1, %c0_2] : memref<32x14xf32, #tpu.memory_space<vmem>>, vector<32x14xf32>
    %2 = vector.extract_strided_slice %1 {offsets = [0, 0], sizes = [32, 9], strides = [1, 1]} : vector<32x14xf32> to vector<32x9xf32>
    %3 = vector.extract_strided_slice %1 {offsets = [0, 9], sizes = [32, 1], strides = [1, 1]} : vector<32x14xf32> to vector<32x1xf32>
    %4 = vector.extract_strided_slice %1 {offsets = [0, 10], sizes = [32, 1], strides = [1, 1]} : vector<32x14xf32> to vector<32x1xf32>
    %5 = vector.extract_strided_slice %1 {offsets = [0, 11], sizes = [32, 1], strides = [1, 1]} : vector<32x14xf32> to vector<32x1xf32>
    %6 = vector.extract_strided_slice %1 {offsets = [0, 12], sizes = [8, 1], strides = [1, 1]} : vector<32x14xf32> to vector<8x1xf32>
    %7 = vector.extract_strided_slice %1 {offsets = [0, 13], sizes = [8, 1], strides = [1, 1]} : vector<32x14xf32> to vector<8x1xf32>
    %c0_3 = arith.constant 0 : index
    %c0_4 = arith.constant 0 : index
    %8 = vector.load %arg7[%c0_3, %c0_4] : memref<16x512xf32, #tpu.memory_space<vmem>>, vector<16x512xf32>
    %9 = vector.extract_strided_slice %8 {offsets = [8, 0], sizes = [8, 512], strides = [1, 1]} : vector<16x512xf32> to vector<8x512xf32>
    %c0_5 = arith.constant 0 : index
    %c0_6 = arith.constant 0 : index
    %10 = vector.load %arg2[%c0_5, %c0_6] : memref<32x8xf32, #tpu.memory_space<vmem>>, vector<32x8xf32>
    %cst = arith.constant dense<0.000000e+00> : vector<32x512xf32>
    %11 = tpu.matmul %10, %0, %cst {dimension_numbers = #tpu.dot_dimension_numbers<[1], [0], [0], [1], [0, 0, 1, 1], [], []>} : vector<32x8xf32>, vector<8x512xf32>, vector<32x512xf32> -> vector<32x512xf32>
    %12 = vector.broadcast %3 : vector<32x1xf32> to vector<32x512xf32>
    %13 = arith.addf %11, %12 : vector<32x512xf32>
    %14 = arith.negf %13 : vector<32x512xf32>
    %15 = math.exp %14 : vector<32x512xf32>
    %cst_7 = arith.constant 1.000000e+00 : f32
    %16 = vector.broadcast %cst_7 : f32 to vector<32x512xf32>
    %17 = arith.addf %16, %15 : vector<32x512xf32>
    %18 = arith.divf %16, %17 : vector<32x512xf32>
    %19 = arith.mulf %13, %18 : vector<32x512xf32>
    %20 = vector.extract_strided_slice %2 {offsets = [0, 4], sizes = [32, 1], strides = [1, 1]} : vector<32x9xf32> to vector<32x1xf32>
    %21 = vector.broadcast %20 : vector<32x1xf32> to vector<32x512xf32>
    %22 = arith.mulf %19, %21 : vector<32x512xf32>
    %c17_i32 = arith.constant 17 : i32
    %23 = tpu.dynamic_rotate %19 by %c17_i32 dim 1 : vector<32x512xf32>, i32 -> vector<32x512xf32>
    %24 = vector.extract_strided_slice %8 {offsets = [0, 0], sizes = [1, 512], strides = [1, 1]} : vector<16x512xf32> to vector<1x512xf32>
    %25 = vector.broadcast %24 : vector<1x512xf32> to vector<32x512xf32>
    %26 = arith.mulf %23, %25 : vector<32x512xf32>
    %27 = vector.extract_strided_slice %2 {offsets = [0, 0], sizes = [32, 1], strides = [1, 1]} : vector<32x9xf32> to vector<32x1xf32>
    %28 = vector.broadcast %27 : vector<32x1xf32> to vector<32x512xf32>
    %29 = arith.mulf %26, %28 : vector<32x512xf32>
    %30 = arith.addf %22, %29 : vector<32x512xf32>
    %c16_i32 = arith.constant 16 : i32
    %31 = tpu.dynamic_rotate %19 by %c16_i32 dim 1 : vector<32x512xf32>, i32 -> vector<32x512xf32>
    %32 = vector.extract_strided_slice %8 {offsets = [1, 0], sizes = [1, 512], strides = [1, 1]} : vector<16x512xf32> to vector<1x512xf32>
    %33 = vector.broadcast %32 : vector<1x512xf32> to vector<32x512xf32>
    %34 = arith.mulf %31, %33 : vector<32x512xf32>
    %35 = vector.extract_strided_slice %2 {offsets = [0, 1], sizes = [32, 1], strides = [1, 1]} : vector<32x9xf32> to vector<32x1xf32>
    %36 = vector.broadcast %35 : vector<32x1xf32> to vector<32x512xf32>
    %37 = arith.mulf %34, %36 : vector<32x512xf32>
    %38 = arith.addf %30, %37 : vector<32x512xf32>
    %c15_i32 = arith.constant 15 : i32
    %39 = tpu.dynamic_rotate %19 by %c15_i32 dim 1 : vector<32x512xf32>, i32 -> vector<32x512xf32>
    %40 = vector.extract_strided_slice %8 {offsets = [2, 0], sizes = [1, 512], strides = [1, 1]} : vector<16x512xf32> to vector<1x512xf32>
    %41 = vector.broadcast %40 : vector<1x512xf32> to vector<32x512xf32>
    %42 = arith.mulf %39, %41 : vector<32x512xf32>
    %43 = vector.extract_strided_slice %2 {offsets = [0, 2], sizes = [32, 1], strides = [1, 1]} : vector<32x9xf32> to vector<32x1xf32>
    %44 = vector.broadcast %43 : vector<32x1xf32> to vector<32x512xf32>
    %45 = arith.mulf %42, %44 : vector<32x512xf32>
    %46 = arith.addf %38, %45 : vector<32x512xf32>
    %c1_i32 = arith.constant 1 : i32
    %47 = tpu.dynamic_rotate %19 by %c1_i32 dim 1 : vector<32x512xf32>, i32 -> vector<32x512xf32>
    %48 = vector.extract_strided_slice %8 {offsets = [3, 0], sizes = [1, 512], strides = [1, 1]} : vector<16x512xf32> to vector<1x512xf32>
    %49 = vector.broadcast %48 : vector<1x512xf32> to vector<32x512xf32>
    %50 = arith.mulf %47, %49 : vector<32x512xf32>
    %51 = vector.extract_strided_slice %2 {offsets = [0, 3], sizes = [32, 1], strides = [1, 1]} : vector<32x9xf32> to vector<32x1xf32>
    %52 = vector.broadcast %51 : vector<32x1xf32> to vector<32x512xf32>
    %53 = arith.mulf %50, %52 : vector<32x512xf32>
    %54 = arith.addf %46, %53 : vector<32x512xf32>
    %c511_i32 = arith.constant 511 : i32
    %55 = tpu.dynamic_rotate %19 by %c511_i32 dim 1 : vector<32x512xf32>, i32 -> vector<32x512xf32>
    %56 = vector.extract_strided_slice %8 {offsets = [4, 0], sizes = [1, 512], strides = [1, 1]} : vector<16x512xf32> to vector<1x512xf32>
    %57 = vector.broadcast %56 : vector<1x512xf32> to vector<32x512xf32>
    %58 = arith.mulf %55, %57 : vector<32x512xf32>
    %59 = vector.extract_strided_slice %2 {offsets = [0, 5], sizes = [32, 1], strides = [1, 1]} : vector<32x9xf32> to vector<32x1xf32>
    %60 = vector.broadcast %59 : vector<32x1xf32> to vector<32x512xf32>
    %61 = arith.mulf %58, %60 : vector<32x512xf32>
    %62 = arith.addf %54, %61 : vector<32x512xf32>
    %c497_i32 = arith.constant 497 : i32
    %63 = tpu.dynamic_rotate %19 by %c497_i32 dim 1 : vector<32x512xf32>, i32 -> vector<32x512xf32>
    %64 = vector.extract_strided_slice %8 {offsets = [5, 0], sizes = [1, 512], strides = [1, 1]} : vector<16x512xf32> to vector<1x512xf32>
    %65 = vector.broadcast %64 : vector<1x512xf32> to vector<32x512xf32>
    %66 = arith.mulf %63, %65 : vector<32x512xf32>
    %67 = vector.extract_strided_slice %2 {offsets = [0, 6], sizes = [32, 1], strides = [1, 1]} : vector<32x9xf32> to vector<32x1xf32>
    %68 = vector.broadcast %67 : vector<32x1xf32> to vector<32x512xf32>
    %69 = arith.mulf %66, %68 : vector<32x512xf32>
    %70 = arith.addf %62, %69 : vector<32x512xf32>
    %c496_i32 = arith.constant 496 : i32
    %71 = tpu.dynamic_rotate %19 by %c496_i32 dim 1 : vector<32x512xf32>, i32 -> vector<32x512xf32>
    %72 = vector.extract_strided_slice %8 {offsets = [6, 0], sizes = [1, 512], strides = [1, 1]} : vector<16x512xf32> to vector<1x512xf32>
    %73 = vector.broadcast %72 : vector<1x512xf32> to vector<32x512xf32>
    %74 = arith.mulf %71, %73 : vector<32x512xf32>
    %75 = vector.extract_strided_slice %2 {offsets = [0, 7], sizes = [32, 1], strides = [1, 1]} : vector<32x9xf32> to vector<32x1xf32>
    %76 = vector.broadcast %75 : vector<32x1xf32> to vector<32x512xf32>
    %77 = arith.mulf %74, %76 : vector<32x512xf32>
    %78 = arith.addf %70, %77 : vector<32x512xf32>
    %c495_i32 = arith.constant 495 : i32
    %79 = tpu.dynamic_rotate %19 by %c495_i32 dim 1 : vector<32x512xf32>, i32 -> vector<32x512xf32>
    %80 = vector.extract_strided_slice %8 {offsets = [7, 0], sizes = [1, 512], strides = [1, 1]} : vector<16x512xf32> to vector<1x512xf32>
    %81 = vector.broadcast %80 : vector<1x512xf32> to vector<32x512xf32>
    %82 = arith.mulf %79, %81 : vector<32x512xf32>
    %83 = vector.extract_strided_slice %2 {offsets = [0, 8], sizes = [32, 1], strides = [1, 1]} : vector<32x9xf32> to vector<32x1xf32>
    %84 = vector.broadcast %83 : vector<32x1xf32> to vector<32x512xf32>
    %85 = arith.mulf %82, %84 : vector<32x512xf32>
    %86 = arith.addf %78, %85 : vector<32x512xf32>
    %87 = vector.broadcast %4 : vector<32x1xf32> to vector<32x512xf32>
    %88 = arith.addf %86, %87 : vector<32x512xf32>
    %89 = arith.negf %88 : vector<32x512xf32>
    %90 = math.exp %89 : vector<32x512xf32>
    %cst_8 = arith.constant 1.000000e+00 : f32
    %91 = vector.broadcast %cst_8 : f32 to vector<32x512xf32>
    %92 = arith.addf %91, %90 : vector<32x512xf32>
    %93 = arith.divf %91, %92 : vector<32x512xf32>
    %94 = arith.mulf %88, %93 : vector<32x512xf32>
    %cst_9 = arith.constant dense<0.000000e+00> : vector<32x8xf32>
    %95 = tpu.matmul %94, %9, %cst_9 {dimension_numbers = #tpu.dot_dimension_numbers<[1], [1], [0], [0], [0, 0, 1, 0], [], []>} : vector<32x512xf32>, vector<8x512xf32>, vector<32x8xf32> -> vector<32x8xf32>
    %c0_10 = arith.constant 0 : index
    %c0_11 = arith.constant 0 : index
    %96 = vector.load %arg4[%c0_10, %c0_11] : memref<8x32xf32, #tpu.memory_space<vmem>>, vector<8x32xf32>
    %cst_12 = arith.constant dense<0.000000e+00> : vector<8x8xf32>
    %97 = tpu.matmul %96, %95, %cst_12 {dimension_numbers = #tpu.dot_dimension_numbers<[1], [0], [0], [1], [0, 0, 1, 1], [], []>} : vector<8x32xf32>, vector<32x8xf32>, vector<8x8xf32> -> vector<8x8xf32>
    %98 = vector.broadcast %7 : vector<8x1xf32> to vector<8x8xf32>
    %99 = arith.addf %97, %98 : vector<8x8xf32>
    %100 = arith.negf %99 : vector<8x8xf32>
    %101 = math.exp %100 : vector<8x8xf32>
    %cst_13 = arith.constant 1.000000e+00 : f32
    %102 = vector.broadcast %cst_13 : f32 to vector<8x8xf32>
    %103 = arith.addf %102, %101 : vector<8x8xf32>
    %104 = arith.divf %102, %103 : vector<8x8xf32>
    %105 = arith.mulf %99, %104 : vector<8x8xf32>
    %c0_14 = arith.constant 0 : index
    %c0_15 = arith.constant 0 : index
    %106 = vector.load %arg5[%c0_14, %c0_15] : memref<32x8xf32, #tpu.memory_space<vmem>>, vector<32x8xf32>
    %cst_16 = arith.constant dense<0.000000e+00> : vector<32x8xf32>
    %107 = tpu.matmul %106, %105, %cst_16 {dimension_numbers = #tpu.dot_dimension_numbers<[1], [0], [0], [1], [0, 0, 1, 1], [], []>} : vector<32x8xf32>, vector<8x8xf32>, vector<32x8xf32> -> vector<32x8xf32>
    %108 = vector.broadcast %5 : vector<32x1xf32> to vector<32x8xf32>
    %109 = arith.addf %107, %108 : vector<32x8xf32>
    %110 = arith.negf %109 : vector<32x8xf32>
    %111 = math.exp %110 : vector<32x8xf32>
    %cst_17 = arith.constant 1.000000e+00 : f32
    %112 = vector.broadcast %cst_17 : f32 to vector<32x8xf32>
    %113 = arith.addf %112, %111 : vector<32x8xf32>
    %114 = arith.divf %112, %113 : vector<32x8xf32>
    %115 = vector.extract_strided_slice %114 {offsets = [0, 0], sizes = [32, 1], strides = [1, 1]} : vector<32x8xf32> to vector<32x1xf32>
    %116 = vector.extract_strided_slice %9 {offsets = [0, 0], sizes = [1, 512], strides = [1, 1]} : vector<8x512xf32> to vector<1x512xf32>
    %117 = vector.broadcast %115 : vector<32x1xf32> to vector<32x512xf32>
    %118 = vector.broadcast %116 : vector<1x512xf32> to vector<32x512xf32>
    %119 = arith.mulf %117, %118 : vector<32x512xf32>
    %120 = vector.extract_strided_slice %114 {offsets = [0, 1], sizes = [32, 1], strides = [1, 1]} : vector<32x8xf32> to vector<32x1xf32>
    %121 = vector.extract_strided_slice %9 {offsets = [1, 0], sizes = [1, 512], strides = [1, 1]} : vector<8x512xf32> to vector<1x512xf32>
    %122 = vector.broadcast %120 : vector<32x1xf32> to vector<32x512xf32>
    %123 = vector.broadcast %121 : vector<1x512xf32> to vector<32x512xf32>
    %124 = arith.mulf %122, %123 : vector<32x512xf32>
    %125 = arith.addf %119, %124 : vector<32x512xf32>
    %126 = arith.mulf %94, %125 : vector<32x512xf32>
    %c0_18 = arith.constant 0 : index
    %c0_19 = arith.constant 0 : index
    %127 = vector.load %arg3[%c0_18, %c0_19] : memref<8x32xf32, #tpu.memory_space<vmem>>, vector<8x32xf32>
    %cst_20 = arith.constant dense<0.000000e+00> : vector<8x512xf32>
    %128 = tpu.matmul %127, %126, %cst_20 {dimension_numbers = #tpu.dot_dimension_numbers<[1], [0], [0], [1], [0, 0, 1, 1], [], []>} : vector<8x32xf32>, vector<32x512xf32>, vector<8x512xf32> -> vector<8x512xf32>
    %129 = vector.broadcast %6 : vector<8x1xf32> to vector<8x512xf32>
    %130 = arith.addf %128, %129 : vector<8x512xf32>
    %131 = arith.addf %130, %0 : vector<8x512xf32>
    %c0_21 = arith.constant 0 : index
    %c0_22 = arith.constant 0 : index
    %132 = vector.load %arg8[%c0_21, %c0_22] : memref<8x512xf32, #tpu.memory_space<vmem>>, vector<8x512xf32>
    tpu.vector_store %arg8[%c0_21, %c0_22], %131 {strides = array<i32>} : memref<8x512xf32, #tpu.memory_space<vmem>>, vector<8x512xf32>,
    return
  }
  func.func @transform_0(%arg0: i32) -> (i32, i32) {
    %c0_i32 = arith.constant 0 : i32
    %c0_i32_0 = arith.constant 0 : i32
    return %c0_i32, %arg0 : i32, i32
  }
  func.func @transform_1(%arg0: i32) -> (i32, i32) {
    %c0_i32 = arith.constant 0 : i32
    %c0_i32_0 = arith.constant 0 : i32
    %c0_i32_1 = arith.constant 0 : i32
    return %c0_i32, %c0_i32_0 : i32, i32
  }
  func.func @transform_2(%arg0: i32) -> (i32, i32) {
    %c0_i32 = arith.constant 0 : i32
    %c0_i32_0 = arith.constant 0 : i32
    %c0_i32_1 = arith.constant 0 : i32
    return %c0_i32, %c0_i32_0 : i32, i32
  }
  func.func @transform_3(%arg0: i32) -> (i32, i32) {
    %c0_i32 = arith.constant 0 : i32
    %c0_i32_0 = arith.constant 0 : i32
    %c0_i32_1 = arith.constant 0 : i32
    return %c0_i32, %c0_i32_0 : i32, i32
  }
  func.func @transform_4(%arg0: i32) -> (i32, i32) {
    %c0_i32 = arith.constant 0 : i32
    %c0_i32_0 = arith.constant 0 : i32
    %c0_i32_1 = arith.constant 0 : i32
    return %c0_i32, %c0_i32_0 : i32, i32
  }
  func.func @transform_5(%arg0: i32) -> (i32, i32) {
    %c0_i32 = arith.constant 0 : i32
    %c0_i32_0 = arith.constant 0 : i32
    %c0_i32_1 = arith.constant 0 : i32
    return %c0_i32, %c0_i32_0 : i32, i32
  }
  func.func @transform_6(%arg0: i32) -> (i32, i32) {
    %c0_i32 = arith.constant 0 : i32
    %c0_i32_0 = arith.constant 0 : i32
    %c0_i32_1 = arith.constant 0 : i32
    return %c0_i32, %c0_i32_0 : i32, i32
  }
  func.func @transform_7(%arg0: i32) -> (i32, i32) {
    %c0_i32 = arith.constant 0 : i32
    %c0_i32_0 = arith.constant 0 : i32
    return %c0_i32, %arg0 : i32, i32
  }
}

</mosaic_0001>

<llo_original>
// kernel: tpu_custom_call.1
$region0: #{tpu_custom_call.1}
  #allocation0 [shape = 'u32[]', space=smem, size = 0x4, offset = 0x4, fixed_abs, tag = 'smem constant byte address 0x4 - core index']
  #allocation1 [shape = 'u32[72,128]{1,0:T(1,128)}', space=vmem, size = 0x9000, scoped, tag = 'internal scratch']
  %s0 = inlined_call_operand.hbm [shape: f32[8,2048], index: 0, kind: input, shape index: {}]
  %s1 = inlined_call_operand.vmem [shape: f32[32,8], index: 1, kind: input, shape index: {}]
  %s2 = inlined_call_operand.vmem [shape: f32[8,32], index: 2, kind: input, shape index: {}]
  %s3 = inlined_call_operand.vmem [shape: f32[8,32], index: 3, kind: input, shape index: {}]
  %s4 = inlined_call_operand.vmem [shape: f32[32,8], index: 4, kind: input, shape index: {}]
  %s5 = inlined_call_operand.vmem [shape: f32[32,14], index: 5, kind: input, shape index: {}]
  %s6 = inlined_call_operand.vmem [shape: f32[16,512], index: 6, kind: input, shape index: {}]
  %s7 = inlined_call_operand.hbm [shape: f32[8,2048], index: 7, kind: output, shape index: {}]
  %s8 = sld [smem:[#allocation0]]
  $region65: #{tpu_custom_call.1} parent=0
    _
  %s10 = ssub.s32 1, %s8
  %s11 = scalar_select 0, %s10, %s8
  $region1: #{tpu_custom_call.1} parent=0
    #allocation2 [shape = 'u8[32768]{0}', space=vmem, size = 0x8000, scoped, tag = 'input window, operand 0']
    #allocation3 [shape = 's32[2]{0}', space=sflag, size = 0x8, scoped, tag = 'scoped memory for tpu_custom_call.1']
    #allocation4 [shape = 's32[2]{0}', space=sflag, size = 0x8, scoped, tag = 'scoped memory for tpu_custom_call.1']
    #allocation5 [shape = 'u8[32768]{0}', space=vmem, size = 0x8000, scoped, tag = 'output window, operand 0']
    %12 = vsyncpa [#allocation3], 0
    %s13 = scalar_lea.sflag [#allocation3], 1
    %14 = vsyncpa %s13, 0
    %15 = vsyncpa [#allocation4], 0
    %s16 = scalar_lea.sflag [#allocation4], 1
    %17 = vsyncpa %s16, 0
    loop: start=0, step=1, limit=6
    $region2: #{tpu_custom_call.1} parent=1 // loop_pre_header
      _
    $region3: #{tpu_custom_call.1} parent=1 // loop_header
      %s19 = sphi 0, %s23
      %p20 = scmp.ge.s32.totalorder %s19, 6
      %s29 = sphi 0, %s31
      %s32 = sphi 0, %s29
      %s33 = sphi 0, %s32
      %s49 = sphi 0, %s33
      %s53 = sphi 0, %s53
      %s55 = sphi 0, %s53
      %s56 = sphi 0, %s55
      %s70 = sphi 0, %s56
      %s74 = sphi 0, %s74
      %s76 = sphi 0, %s74
      %s77 = sphi 0, %s76
      %s91 = sphi 0, %s77
      %s95 = sphi 0, %s95
      %s97 = sphi 0, %s95
      %s98 = sphi 0, %s97
      %s112 = sphi 0, %s98
      %s116 = sphi 0, %s116
      %s118 = sphi 0, %s116
      %s119 = sphi 0, %s118
      %s133 = sphi 0, %s119
      %s137 = sphi 0, %s137
      %s139 = sphi 0, %s137
      %s140 = sphi 0, %s139
      %s154 = sphi 0, %s140
      %s158 = sphi 0, %s158
      %s160 = sphi 0, %s158
      %s161 = sphi 0, %s160
      %s175 = sphi 0, %s161
      %s181 = sphi 0, %s183
      %s184 = sphi 0, %s181
      %s185 = sphi 0, %s184
      %s201 = sphi 0, %s185
    $region4: #{tpu_custom_call.1} parent=1 // loop_header_branch
      %22 = sbr.rel (%p20) target = $region8
    $region5: #{tpu_custom_call.1} parent=1 // loop_body
      %s24 = ssub.s32 %s19, 1
      %s25 = ssub.s32 %s19, 2
      %s26 = sadd.s32 %s19, 1
      %s27 = ssub.s32 %s19, %s26
      %p28 = scmp.eq.s32.totalorder %s27, 0
      %s30 = sadd.s32 %s29, 1
      %s31 = scalar_select %p28, %s29, %s30
      %p34 = pneg %p28
      %p35 = scmp.eq.s32.totalorder %s19, 3
      %p36 = por %p34, %p35
      %p37 = scmp.ne.s32.totalorder %s29, %s32
      %p38 = scmp.eq.s32.totalorder %s19, 0
      %p39 = por %p37, %p38
      %p40 = scmp.ne.s32.totalorder %s29, %s32
      %p41 = scmp.eq.s32.totalorder %s24, 3
      %p42 = por %p40, %p41
      %p43 = scmp.ne.s32.totalorder %s32, %s33
      %p44 = scmp.eq.s32.totalorder %s24, 0
      %p45 = por %p43, %p44
      %p46 = scmp.ne.s32.totalorder %s32, %s33
      %p47 = scmp.eq.s32.totalorder %s25, 3
      %p48 = por %p46, %p47
      %p50 = scmp.ne.s32.totalorder %s33, %s49
      %p51 = scmp.eq.s32.totalorder %s25, 0
      %p52 = por %p50, %p51
      %s54 = sadd.s32 %s53, 1
      %p57 = scmp.eq.s32.totalorder %s19, 3
      %p58 = scmp.ne.s32.totalorder %s53, %s55
      %p59 = scmp.eq.s32.totalorder %s19, 0
      %p60 = por %p58, %p59
      %p61 = scmp.ne.s32.totalorder %s53, %s55
      %p62 = scmp.eq.s32.totalorder %s24, 3
      %p63 = por %p61, %p62
      %p64 = scmp.ne.s32.totalorder %s55, %s56
      %p65 = scmp.eq.s32.totalorder %s24, 0
      %p66 = por %p64, %p65
      %p67 = scmp.ne.s32.totalorder %s55, %s56
      %p68 = scmp.eq.s32.totalorder %s25, 3
      %p69 = por %p67, %p68
      %p71 = scmp.ne.s32.totalorder %s56, %s70
      %p72 = scmp.eq.s32.totalorder %s25, 0
      %p73 = por %p71, %p72
      %s75 = sadd.s32 %s74, 1
      %p78 = scmp.eq.s32.totalorder %s19, 3
      %p79 = scmp.ne.s32.totalorder %s74, %s76
      %p80 = scmp.eq.s32.totalorder %s19, 0
      %p81 = por %p79, %p80
      %p82 = scmp.ne.s32.totalorder %s74, %s76
      %p83 = scmp.eq.s32.totalorder %s24, 3
      %p84 = por %p82, %p83
      %p85 = scmp.ne.s32.totalorder %s76, %s77
      %p86 = scmp.eq.s32.totalorder %s24, 0
      %p87 = por %p85, %p86
      %p88 = scmp.ne.s32.totalorder %s76, %s77
      %p89 = scmp.eq.s32.totalorder %s25, 3
      %p90 = por %p88, %p89
      %p92 = scmp.ne.s32.totalorder %s77, %s91
      %p93 = scmp.eq.s32.totalorder %s25, 0
      %p94 = por %p92, %p93
      %s96 = sadd.s32 %s95, 1
      %p99 = scmp.eq.s32.totalorder %s19, 3
      %p100 = scmp.ne.s32.totalorder %s95, %s97
      %p101 = scmp.eq.s32.totalorder %s19, 0
      %p102 = por %p100, %p101
      %p103 = scmp.ne.s32.totalorder %s95, %s97
      %p104 = scmp.eq.s32.totalorder %s24, 3
      %p105 = por %p103, %p104
      %p106 = scmp.ne.s32.totalorder %s97, %s98
      %p107 = scmp.eq.s32.totalorder %s24, 0
      %p108 = por %p106, %p107
      %p109 = scmp.ne.s32.totalorder %s97, %s98
      %p110 = scmp.eq.s32.totalorder %s25, 3
      %p111 = por %p109, %p110
      %p113 = scmp.ne.s32.totalorder %s98, %s112
      %p114 = scmp.eq.s32.totalorder %s25, 0
      %p115 = por %p113, %p114
      %s117 = sadd.s32 %s116, 1
      %p120 = scmp.eq.s32.totalorder %s19, 3
      %p121 = scmp.ne.s32.totalorder %s116, %s118
      %p122 = scmp.eq.s32.totalorder %s19, 0
      %p123 = por %p121, %p122
      %p124 = scmp.ne.s32.totalorder %s116, %s118
      %p125 = scmp.eq.s32.totalorder %s24, 3
      %p126 = por %p124, %p125
      %p127 = scmp.ne.s32.totalorder %s118, %s119
      %p128 = scmp.eq.s32.totalorder %s24, 0
      %p129 = por %p127, %p128
      %p130 = scmp.ne.s32.totalorder %s118, %s119
      %p131 = scmp.eq.s32.totalorder %s25, 3
      %p132 = por %p130, %p131
      %p134 = scmp.ne.s32.totalorder %s119, %s133
      %p135 = scmp.eq.s32.totalorder %s25, 0
      %p136 = por %p134, %p135
      %s138 = sadd.s32 %s137, 1
      %p141 = scmp.eq.s32.totalorder %s19, 3
      %p142 = scmp.ne.s32.totalorder %s137, %s139
      %p143 = scmp.eq.s32.totalorder %s19, 0
      %p144 = por %p142, %p143
      %p145 = scmp.ne.s32.totalorder %s137, %s139
      %p146 = scmp.eq.s32.totalorder %s24, 3
      %p147 = por %p145, %p146
      %p148 = scmp.ne.s32.totalorder %s139, %s140
      %p149 = scmp.eq.s32.totalorder %s24, 0
      %p150 = por %p148, %p149
      %p151 = scmp.ne.s32.totalorder %s139, %s140
      %p152 = scmp.eq.s32.totalorder %s25, 3
      %p153 = por %p151, %p152
      %p155 = scmp.ne.s32.totalorder %s140, %s154
      %p156 = scmp.eq.s32.totalorder %s25, 0
      %p157 = por %p155, %p156
      %s159 = sadd.s32 %s158, 1
      %p162 = scmp.eq.s32.totalorder %s19, 3
      %p163 = scmp.ne.s32.totalorder %s158, %s160
      %p164 = scmp.eq.s32.totalorder %s19, 0
      %p165 = por %p163, %p164
      %p166 = scmp.ne.s32.totalorder %s158, %s160
      %p167 = scmp.eq.s32.totalorder %s24, 3
      %p168 = por %p166, %p167
      %p169 = scmp.ne.s32.totalorder %s160, %s161
      %p170 = scmp.eq.s32.totalorder %s24, 0
      %p171 = por %p169, %p170
      %p172 = scmp.ne.s32.totalorder %s160, %s161
      %p173 = scmp.eq.s32.totalorder %s25, 3
      %p174 = por %p172, %p173
      %p176 = scmp.ne.s32.totalorder %s161, %s175
      %p177 = scmp.eq.s32.totalorder %s25, 0
      %p178 = por %p176, %p177
      %s179 = ssub.s32 %s19, %s26
      %p180 = scmp.eq.s32.totalorder %s179, 0
      %s182 = sadd.s32 %s181, 1
      %s183 = scalar_select %p180, %s181, %s182
      %p186 = pneg %p180
      %p187 = scmp.eq.s32.totalorder %s19, 3
      %p188 = por %p186, %p187
      %p189 = scmp.ne.s32.totalorder %s181, %s184
      %p190 = scmp.eq.s32.totalorder %s19, 0
      %p191 = por %p189, %p190
      %p192 = scmp.ne.s32.totalorder %s181, %s184
      %p193 = scmp.eq.s32.totalorder %s24, 3
      %p194 = por %p192, %p193
      %p195 = scmp.ne.s32.totalorder %s184, %s185
      %p196 = scmp.eq.s32.totalorder %s24, 0
      %p197 = por %p195, %p196
      %p198 = scmp.ne.s32.totalorder %s184, %s185
      %p199 = scmp.eq.s32.totalorder %s25, 3
      %p200 = por %p198, %p199
      %p202 = scmp.ne.s32.totalorder %s185, %s201
      %p203 = scmp.eq.s32.totalorder %s25, 0
      %p204 = por %p202, %p203
      %p205 = scmp.le.s32.totalorder 1, %s19
      %p206 = scmp.lt.s32.totalorder %s19, 5
      %p207 = pnand %p205, %p206
      %p208 = pneg %p207
      // Predicated region
      $region9: #{tpu_custom_call.1} parent=5 // pred_check
        _
      $region10: #{tpu_custom_call.1} parent=5 // pred_check_branch
        %210 = sbr.rel (%p207) target = $region12
      $region11: #{tpu_custom_call.1} parent=5 // pred_region
        %s211 = ssub.s32 %s19, 1
        // Predicated region
        $region13: #{tpu_custom_call.1} parent=11 // pred_check
          %p212 = pneg %p66
        $region14: #{tpu_custom_call.1} parent=11 // pred_check_branch
          %214 = sbr.rel (%p212) target = $region16
        $region15: #{tpu_custom_call.1} parent=11 // pred_region
          _
        $region16: #{tpu_custom_call.1} parent=11 // pred_fallthru
          _
        // Predicated region
        $region17: #{tpu_custom_call.1} parent=11 // pred_check
          %p215 = pneg %p87
        $region18: #{tpu_custom_call.1} parent=11 // pred_check_branch
          %217 = sbr.rel (%p215) target = $region20
        $region19: #{tpu_custom_call.1} parent=11 // pred_region
          _
        $region20: #{tpu_custom_call.1} parent=11 // pred_fallthru
          _
        // Predicated region
        $region21: #{tpu_custom_call.1} parent=11 // pred_check
          %p218 = pneg %p108
        $region22: #{tpu_custom_call.1} parent=11 // pred_check_branch
          %220 = sbr.rel (%p218) target = $region24
        $region23: #{tpu_custom_call.1} parent=11 // pred_region
          _
        $region24: #{tpu_custom_call.1} parent=11 // pred_fallthru
          _
        // Predicated region
        $region25: #{tpu_custom_call.1} parent=11 // pred_check
          %p221 = pneg %p129
        $region26: #{tpu_custom_call.1} parent=11 // pred_check_branch
          %223 = sbr.rel (%p221) target = $region28
        $region27: #{tpu_custom_call.1} parent=11 // pred_region
          _
        $region28: #{tpu_custom_call.1} parent=11 // pred_fallthru
          _
        // Predicated region
        $region29: #{tpu_custom_call.1} parent=11 // pred_check
          %p224 = pneg %p150
        $region30: #{tpu_custom_call.1} parent=11 // pred_check_branch
          %226 = sbr.rel (%p224) target = $region32
        $region31: #{tpu_custom_call.1} parent=11 // pred_region
          _
        $region32: #{tpu_custom_call.1} parent=11 // pred_fallthru
          _
        // Predicated region
        $region33: #{tpu_custom_call.1} parent=11 // pred_check
          %p227 = pneg %p171
        $region34: #{tpu_custom_call.1} parent=11 // pred_check_branch
          %229 = sbr.rel (%p227) target = $region36
        $region35: #{tpu_custom_call.1} parent=11 // pred_region
          _
        $region36: #{tpu_custom_call.1} parent=11 // pred_fallthru
          _
      $region12: #{tpu_custom_call.1} parent=5 // pred_fallthru
        _
      %p230 = scmp.lt.s32.totalorder %s19, 4
      // Predicated region
      $region37: #{tpu_custom_call.1} parent=5 // pred_check
        %p231 = pneg %p230
      $region38: #{tpu_custom_call.1} parent=5 // pred_check_branch
        %233 = sbr.rel (%p231) target = $region40
      $region39: #{tpu_custom_call.1} parent=5 // pred_region
        // Predicated region
        $region41: #{tpu_custom_call.1} parent=39 // pred_check
          %p234 = pneg %p39
        $region42: #{tpu_custom_call.1} parent=39 // pred_check_branch
          %236 = sbr.rel (%p234) target = $region44
        $region43: #{tpu_custom_call.1} parent=39 // pred_region
          %s237 = sand.u32 %s29, 1
          %s238 = scalar_lea.sflag [#allocation3], %s237
          %s239 = sand.u32 %s29, 1
          %s240 = smul.addr %s239, 32
          %s241 = scalar_lea.vmem [#allocation2], %s240
          %s242 = smul.u32 4, %s19
          %244 = vsyncadd %s238, 0
          %s245 = smul.addr %s242, 8
          %s246 = scalar_lea.hbm %s0, %s245
          %s248 = sshll.u32 %s246, 4
          %s249 = int_to_ptr.hbm [resolvable:$true] %s248
          %s250 = sshll.u32 %s241, 4
          %s251 = int_to_ptr.vmem [resolvable:$true] %s250
          %253 = dma.hbm_to_vmem [thread:$0]  %s249, 512, %s251, %s238
        $region44: #{tpu_custom_call.1} parent=39 // pred_fallthru
          _
      $region40: #{tpu_custom_call.1} parent=5 // pred_fallthru
        _
      %p254 = scmp.le.s32.totalorder 1, %s19
      %p255 = scmp.lt.s32.totalorder %s19, 5
      %p256 = pnand %p254, %p255
      %p257 = pneg %p256
      // Predicated region
      $region45: #{tpu_custom_call.1} parent=5 // pred_check
        _
      $region46: #{tpu_custom_call.1} parent=5 // pred_check_branch
        %259 = sbr.rel (%p256) target = $region48
      $region47: #{tpu_custom_call.1} parent=5 // pred_region
        %s260 = ssub.s32 %s19, 1
        %s261 = sand.u32 %s32, 1
        %s262 = scalar_lea.sflag [#allocation3], %s261
        %s263 = sand.u32 %s32, 1
        %s264 = smul.addr %s263, 32
        %s265 = scalar_lea.vmem [#allocation2], %s264
        // Predicated region
        $region49: #{tpu_custom_call.1} parent=47 // pred_check
          %p266 = pneg %p45
        $region50: #{tpu_custom_call.1} parent=47 // pred_check_branch
          %268 = sbr.rel (%p266) target = $region52
        $region51: #{tpu_custom_call.1} parent=47 // pred_region
          %270 = dma.done %s262, 512
        $region52: #{tpu_custom_call.1} parent=47 // pred_fallthru
          _
        %s271 = sand.u32 %s32, 1
        %s272 = scalar_lea.sflag [#allocation3], %s271
        %s273 = sand.u32 %s32, 1
        %s274 = smul.addr %s273, 32
        %s275 = scalar_lea.vmem [#allocation2], %s274
        %p276 = pneg %p45
        %p277 = pneg %p42
        %p278 = pneg %p66
        %p279 = pneg %p63
        %p280 = pneg %p87
        %p281 = pneg %p84
        %p282 = pneg %p108
        %p283 = pneg %p105
        %p284 = pneg %p129
        %p285 = pneg %p126
        %p286 = pneg %p150
        %p287 = pneg %p147
        %p288 = pneg %p171
        %p289 = pneg %p168
        %p290 = pneg %p197
        %p291 = pneg %p194
        %s292 = sand.u32 %s184, 1
        %s293 = scalar_lea.sflag [#allocation4], %s292
        %s294 = sand.u32 %s184, 1
        %s295 = smul.addr %s294, 32
        %s296 = scalar_lea.vmem [#allocation5], %s295
        %s297 = smul.u32 4, %s24
        %s298 = smul.u32 4, %s24
        %v299 = vld [vmem:[%s265] sm:$0xff]
        %v300 = vld [vmem:[%s265 + $0x8] sm:$0xff]
        %v301 = vld [vmem:[%s265 + $0x10] sm:$0xff]
        %v302 = vld [vmem:[%s265 + $0x18] sm:$0xff]
        %v303 = vld [vmem:[%s5] sm:$0xff]
        %v304 = vld [vmem:[%s5 + $0x8] sm:$0xff]
        %v305 = vld [vmem:[%s5 + $0x10] sm:$0xff]
        %v306 = vld [vmem:[%s5 + $0x18] sm:$0xff]
        %v307 = vld [vmem:[%s6] sm:$0xff]
        %v308 = vld [vmem:[%s6 + $0x8] sm:$0xff]
        %v309 = vld [vmem:[%s6 + $0x10] sm:$0xff]
        %v310 = vld [vmem:[%s6 + $0x18] sm:$0xff]
        %v311 = vld [vmem:[%s6 + $0x20] sm:$0xff]
        %v312 = vld [vmem:[%s6 + $0x28] sm:$0xff]
        %v313 = vld [vmem:[%s6 + $0x30] sm:$0xff]
        %v314 = vld [vmem:[%s6 + $0x38] sm:$0xff]
        %v315 = vld [vmem:[%s1] sm:$0xff]
        %v316 = vld [vmem:[%s1 + $0x8] sm:$0xff]
        %v317 = vld [vmem:[%s1 + $0x10] sm:$0xff]
        %v318 = vld [vmem:[%s1 + $0x18] sm:$0xff]
        %320 = vset.pattern.permute.xlu0 9
        %321 = vperm.xlu0 %320, %v303
        %v322 = vpop.permute.xlu0 %321
        %325 = vset.pattern.permute.xlu0 9
        %326 = vperm.xlu0 %325, %v304
        %v327 = vpop.permute.xlu0 %326
        %330 = vset.pattern.permute.xlu0 9
        %331 = vperm.xlu0 %330, %v305
        %v332 = vpop.permute.xlu0 %331
        %335 = vset.pattern.permute.xlu0 9
        %336 = vperm.xlu0 %335, %v306
        %v337 = vpop.permute.xlu0 %336
        %vm339 = vcmask 64512
        %v341 = vsel %vm339, %v315, 0
        %v344 = vsel %vm339, %v316, 0
        %v347 = vsel %vm339, %v317, 0
        %v350 = vsel %vm339, %v318, 0
        %352 = vmatpush.msra.mxu0 0.0
        %353 = vmatpush.msra.mxu0 0.0
        %354 = vmatpush.msra.mxu0 0.0
        %355 = vmatpush.msra.mxu0 0.0
        %356 = vmatpush.msra.mxu0 0.0
        %357 = vmatpush.msra.mxu0 0.0
        %358 = vmatpush.msra.mxu0 0.0
        %359 = vmatpush.msra.mxu0 0.0
        %360 = vmatpush.msra.mxu0 0.0
        %361 = vmatpush.msra.mxu0 0.0
        %362 = vmatpush.msra.mxu0 0.0
        %363 = vmatpush.msra.mxu0 0.0
        %364 = vmatpush.msra.mxu0 0.0
        %365 = vmatpush.msra.mxu0 0.0
        %366 = vmatpush.msra.mxu0 0.0
        %367 = vmatpush.msra.mxu0 %v299
        %368 = vmatmul.f32.gmra.mxu0 %v341
        %v369 = vpop.f32.mrf.mxu0
        %v370 = vadd.f32 %v322, %v369
        %371 = vmatmul.f32.gmra.mxu0 %v344
        %v372 = vpop.f32.mrf.mxu0
        %v373 = vadd.f32 %v327, %v372
        %374 = vmatmul.f32.gmra.mxu0 %v347
        %v375 = vpop.f32.mrf.mxu0
        %v376 = vadd.f32 %v332, %v375
        %377 = vmatmul.f32.gmra.mxu0 %v350
        %v378 = vpop.f32.mrf.mxu0
        %v379 = vadd.f32 %v337, %v378
        %380 = vdwg.mxu0
        %381 = vmatpush.msra.mxu0 0.0
        %382 = vmatpush.msra.mxu0 0.0
        %383 = vmatpush.msra.mxu0 0.0
        %384 = vmatpush.msra.mxu0 0.0
        %385 = vmatpush.msra.mxu0 0.0
        %386 = vmatpush.msra.mxu0 0.0
        %387 = vmatpush.msra.mxu0 0.0
        %388 = vmatpush.msra.mxu0 0.0
        %389 = vmatpush.msra.mxu0 0.0
        %390 = vmatpush.msra.mxu0 0.0
        %391 = vmatpush.msra.mxu0 0.0
        %392 = vmatpush.msra.mxu0 0.0
        %393 = vmatpush.msra.mxu0 0.0
        %394 = vmatpush.msra.mxu0 0.0
        %395 = vmatpush.msra.mxu0 0.0
        %396 = vmatpush.msra.mxu0 %v300
        %397 = vmatmul.f32.gmra.mxu0 %v341
        %v398 = vpop.f32.mrf.mxu0
        %v399 = vadd.f32 %v322, %v398
        %400 = vmatmul.f32.gmra.mxu0 %v344
        %v401 = vpop.f32.mrf.mxu0
        %v402 = vadd.f32 %v327, %v401
        %403 = vmatmul.f32.gmra.mxu0 %v347
        %v404 = vpop.f32.mrf.mxu0
        %v405 = vadd.f32 %v332, %v404
        %406 = vmatmul.f32.gmra.mxu0 %v350
        %v407 = vpop.f32.mrf.mxu0
        %v408 = vadd.f32 %v337, %v407
        %409 = vdwg.mxu0
        %410 = vmatpush.msra.mxu0 0.0
        %411 = vmatpush.msra.mxu0 0.0
        %412 = vmatpush.msra.mxu0 0.0
        %413 = vmatpush.msra.mxu0 0.0
        %414 = vmatpush.msra.mxu0 0.0
        %415 = vmatpush.msra.mxu0 0.0
        %416 = vmatpush.msra.mxu0 0.0
        %417 = vmatpush.msra.mxu0 0.0
        %418 = vmatpush.msra.mxu0 0.0
        %419 = vmatpush.msra.mxu0 0.0
        %420 = vmatpush.msra.mxu0 0.0
        %421 = vmatpush.msra.mxu0 0.0
        %422 = vmatpush.msra.mxu0 0.0
        %423 = vmatpush.msra.mxu0 0.0
        %424 = vmatpush.msra.mxu0 0.0
        %425 = vmatpush.msra.mxu0 %v301
        %426 = vmatmul.f32.gmra.mxu0 %v341
        %v427 = vpop.f32.mrf.mxu0
        %v428 = vadd.f32 %v322, %v427
        %429 = vmatmul.f32.gmra.mxu0 %v344
        %v430 = vpop.f32.mrf.mxu0
        %v431 = vadd.f32 %v327, %v430
        %432 = vmatmul.f32.gmra.mxu0 %v347
        %v433 = vpop.f32.mrf.mxu0
        %v434 = vadd.f32 %v332, %v433
        %435 = vmatmul.f32.gmra.mxu0 %v350
        %v436 = vpop.f32.mrf.mxu0
        %v437 = vadd.f32 %v337, %v436
        %438 = vdwg.mxu0
        %439 = vmatpush.msra.mxu0 0.0
        %440 = vmatpush.msra.mxu0 0.0
        %441 = vmatpush.msra.mxu0 0.0
        %442 = vmatpush.msra.mxu0 0.0
        %443 = vmatpush.msra.mxu0 0.0
        %444 = vmatpush.msra.mxu0 0.0
        %445 = vmatpush.msra.mxu0 0.0
        %446 = vmatpush.msra.mxu0 0.0
        %447 = vmatpush.msra.mxu0 0.0
        %448 = vmatpush.msra.mxu0 0.0
        %449 = vmatpush.msra.mxu0 0.0
        %450 = vmatpush.msra.mxu0 0.0
        %451 = vmatpush.msra.mxu0 0.0
        %452 = vmatpush.msra.mxu0 0.0
        %453 = vmatpush.msra.mxu0 0.0
        %454 = vmatpush.msra.mxu0 %v302
        %455 = vmatmul.f32.gmra.mxu0 %v341
        %v456 = vpop.f32.mrf.mxu0
        %v457 = vadd.f32 %v322, %v456
        %458 = vmatmul.f32.gmra.mxu0 %v344
        %v459 = vpop.f32.mrf.mxu0
        %v460 = vadd.f32 %v327, %v459
        %461 = vmatmul.f32.gmra.mxu0 %v347
        %v462 = vpop.f32.mrf.mxu0
        %v463 = vadd.f32 %v332, %v462
        %464 = vmatmul.f32.gmra.mxu0 %v350
        %v465 = vpop.f32.mrf.mxu0
        %v466 = vadd.f32 %v337, %v465
        %467 = vdwg.mxu0
        %v468 = vxor.u32 %v370, 2147483648
        %v469 = vxor.u32 %v399, 2147483648
        %v470 = vxor.u32 %v428, 2147483648
        %v471 = vxor.u32 %v457, 2147483648
        %v472 = vxor.u32 %v373, 2147483648
        %v473 = vxor.u32 %v402, 2147483648
        %v474 = vxor.u32 %v431, 2147483648
        %v475 = vxor.u32 %v460, 2147483648
        %v476 = vxor.u32 %v376, 2147483648
        %v477 = vxor.u32 %v405, 2147483648
        %v478 = vxor.u32 %v434, 2147483648
        %v479 = vxor.u32 %v463, 2147483648
        %v480 = vxor.u32 %v379, 2147483648
        %v481 = vxor.u32 %v408, 2147483648
        %v482 = vxor.u32 %v437, 2147483648
        %v483 = vxor.u32 %v466, 2147483648
        %v484 = vmul.f32 %v468, 1.442695
        %v485 = vpow.pop %v484
        %v486 = vmul.f32 %v469, 1.442695
        %v487 = vpow.pop %v486
        %v488 = vmul.f32 %v470, 1.442695
        %v489 = vpow.pop %v488
        %v490 = vmul.f32 %v471, 1.442695
        %v491 = vpow.pop %v490
        %v492 = vmul.f32 %v472, 1.442695
        %v493 = vpow.pop %v492
        %v494 = vmul.f32 %v473, 1.442695
        %v495 = vpow.pop %v494
        %v496 = vmul.f32 %v474, 1.442695
        %v497 = vpow.pop %v496
        %v498 = vmul.f32 %v475, 1.442695
        %v499 = vpow.pop %v498
        %v500 = vmul.f32 %v476, 1.442695
        %v501 = vpow.pop %v500
        %v502 = vmul.f32 %v477, 1.442695
        %v503 = vpow.pop %v502
        %v504 = vmul.f32 %v478, 1.442695
        %v505 = vpow.pop %v504
        %v506 = vmul.f32 %v479, 1.442695
        %v507 = vpow.pop %v506
        %v508 = vmul.f32 %v480, 1.442695
        %v509 = vpow.pop %v508
        %v510 = vmul.f32 %v481, 1.442695
        %v511 = vpow.pop %v510
        %v512 = vmul.f32 %v482, 1.442695
        %v513 = vpow.pop %v512
        %v514 = vmul.f32 %v483, 1.442695
        %v515 = vpow.pop %v514
        %v516 = vadd.f32 %v485, 1.0
        %v517 = vadd.f32 %v487, 1.0
        %v518 = vadd.f32 %v489, 1.0
        %v519 = vadd.f32 %v491, 1.0
        %v520 = vadd.f32 %v493, 1.0
        %v521 = vadd.f32 %v495, 1.0
        %v522 = vadd.f32 %v497, 1.0
        %v523 = vadd.f32 %v499, 1.0
        %v524 = vadd.f32 %v501, 1.0
        %v525 = vadd.f32 %v503, 1.0
        %v526 = vadd.f32 %v505, 1.0
        %v527 = vadd.f32 %v507, 1.0
        %v528 = vadd.f32 %v509, 1.0
        %v529 = vadd.f32 %v511, 1.0
        %v530 = vadd.f32 %v513, 1.0
        %v531 = vadd.f32 %v515, 1.0
        %v532 = vrcp.pop %v516
        %v533 = vmul.f32 %v516, %v532
        %v534 = vsub.f32 1.0, %v533
        %v535 = vmul.f32 %v532, %v534
        %v536 = vadd.f32 %v532, %v535
        %vm537 = vweird.f32 %v516
        %vm538 = vweird.f32 %v532
        %vm539 = vmor %vm537, %vm538
        %v540 = vsel %vm539, %v532, %v536
        %v541 = vand.u32 2147483647, %v516
        %vm542 = vcmp.eq.f32.partialorder %v541, 8.507059e+37
        %v543 = vand.u32 %v516, 2147483648
        %v544 = vor.u32 1.1754944e-38, %v543
        %v545 = vsel %vm542, %v544, %v540
        %v546 = vmul.f32 1.0, %v545
        %v547 = vrcp.pop %v517
        %v548 = vmul.f32 %v517, %v547
        %v549 = vsub.f32 1.0, %v548
        %v550 = vmul.f32 %v547, %v549
        %v551 = vadd.f32 %v547, %v550
        %vm552 = vweird.f32 %v517
        %vm553 = vweird.f32 %v547
        %vm554 = vmor %vm552, %vm553
        %v555 = vsel %vm554, %v547, %v551
        %v556 = vand.u32 2147483647, %v517
        %vm557 = vcmp.eq.f32.partialorder %v556, 8.507059e+37
        %v558 = vand.u32 %v517, 2147483648
        %v559 = vor.u32 1.1754944e-38, %v558
        %v560 = vsel %vm557, %v559, %v555
        %v561 = vmul.f32 1.0, %v560
        %v562 = vrcp.pop %v518
        %v563 = vmul.f32 %v518, %v562
        %v564 = vsub.f32 1.0, %v563
        %v565 = vmul.f32 %v562, %v564
        %v566 = vadd.f32 %v562, %v565
        %vm567 = vweird.f32 %v518
        %vm568 = vweird.f32 %v562
        %vm569 = vmor %vm567, %vm568
        %v570 = vsel %vm569, %v562, %v566
        %v571 = vand.u32 2147483647, %v518
        %vm572 = vcmp.eq.f32.partialorder %v571, 8.507059e+37
        %v573 = vand.u32 %v518, 2147483648
        %v574 = vor.u32 1.1754944e-38, %v573
        %v575 = vsel %vm572, %v574, %v570
        %v576 = vmul.f32 1.0, %v575
        %v577 = vrcp.pop %v519
        %v578 = vmul.f32 %v519, %v577
        %v579 = vsub.f32 1.0, %v578
        %v580 = vmul.f32 %v577, %v579
        %v581 = vadd.f32 %v577, %v580
        %vm582 = vweird.f32 %v519
        %vm583 = vweird.f32 %v577
        %vm584 = vmor %vm582, %vm583
        %v585 = vsel %vm584, %v577, %v581
        %v586 = vand.u32 2147483647, %v519
        %vm587 = vcmp.eq.f32.partialorder %v586, 8.507059e+37
        %v588 = vand.u32 %v519, 2147483648
        %v589 = vor.u32 1.1754944e-38, %v588
        %v590 = vsel %vm587, %v589, %v585
        %v591 = vmul.f32 1.0, %v590
        %v592 = vrcp.pop %v520
        %v593 = vmul.f32 %v520, %v592
        %v594 = vsub.f32 1.0, %v593
        %v595 = vmul.f32 %v592, %v594
        %v596 = vadd.f32 %v592, %v595
        %vm597 = vweird.f32 %v520
        %vm598 = vweird.f32 %v592
        %vm599 = vmor %vm597, %vm598
        %v600 = vsel %vm599, %v592, %v596
        %v601 = vand.u32 2147483647, %v520
        %vm602 = vcmp.eq.f32.partialorder %v601, 8.507059e+37
        %v603 = vand.u32 %v520, 2147483648
        %v604 = vor.u32 1.1754944e-38, %v603
        %v605 = vsel %vm602, %v604, %v600
        %v606 = vmul.f32 1.0, %v605
        %v607 = vrcp.pop %v521
        %v608 = vmul.f32 %v521, %v607
        %v609 = vsub.f32 1.0, %v608
        %v610 = vmul.f32 %v607, %v609
        %v611 = vadd.f32 %v607, %v610
        %vm612 = vweird.f32 %v521
        %vm613 = vweird.f32 %v607
        %vm614 = vmor %vm612, %vm613
        %v615 = vsel %vm614, %v607, %v611
        %v616 = vand.u32 2147483647, %v521
        %vm617 = vcmp.eq.f32.partialorder %v616, 8.507059e+37
        %v618 = vand.u32 %v521, 2147483648
        %v619 = vor.u32 1.1754944e-38, %v618
        %v620 = vsel %vm617, %v619, %v615
        %v621 = vmul.f32 1.0, %v620
        %v622 = vrcp.pop %v522
        %v623 = vmul.f32 %v522, %v622
        %v624 = vsub.f32 1.0, %v623
        %v625 = vmul.f32 %v622, %v624
        %v626 = vadd.f32 %v622, %v625
        %vm627 = vweird.f32 %v522
        %vm628 = vweird.f32 %v622
        %vm629 = vmor %vm627, %vm628
        %v630 = vsel %vm629, %v622, %v626
        %v631 = vand.u32 2147483647, %v522
        %vm632 = vcmp.eq.f32.partialorder %v631, 8.507059e+37
        %v633 = vand.u32 %v522, 2147483648
        %v634 = vor.u32 1.1754944e-38, %v633
        %v635 = vsel %vm632, %v634, %v630
        %v636 = vmul.f32 1.0, %v635
        %v637 = vrcp.pop %v523
        %v638 = vmul.f32 %v523, %v637
        %v639 = vsub.f32 1.0, %v638
        %v640 = vmul.f32 %v637, %v639
        %v641 = vadd.f32 %v637, %v640
        %vm642 = vweird.f32 %v523
        %vm643 = vweird.f32 %v637
        %vm644 = vmor %vm642, %vm643
        %v645 = vsel %vm644, %v637, %v641
        %v646 = vand.u32 2147483647, %v523
        %vm647 = vcmp.eq.f32.partialorder %v646, 8.507059e+37
        %v648 = vand.u32 %v523, 2147483648
        %v649 = vor.u32 1.1754944e-38, %v648
        %v650 = vsel %vm647, %v649, %v645
        %v651 = vmul.f32 1.0, %v650
        %v652 = vrcp.pop %v524
        %v653 = vmul.f32 %v524, %v652
        %v654 = vsub.f32 1.0, %v653
        %v655 = vmul.f32 %v652, %v654
        %v656 = vadd.f32 %v652, %v655
        %vm657 = vweird.f32 %v524
        %vm658 = vweird.f32 %v652
        %vm659 = vmor %vm657, %vm658
        %v660 = vsel %vm659, %v652, %v656
        %v661 = vand.u32 2147483647, %v524
        %vm662 = vcmp.eq.f32.partialorder %v661, 8.507059e+37
        %v663 = vand.u32 %v524, 2147483648
        %v664 = vor.u32 1.1754944e-38, %v663
        %v665 = vsel %vm662, %v664, %v660
        %v666 = vmul.f32 1.0, %v665
        %v667 = vrcp.pop %v525
        %v668 = vmul.f32 %v525, %v667
        %v669 = vsub.f32 1.0, %v668
        %v670 = vmul.f32 %v667, %v669
        %v671 = vadd.f32 %v667, %v670
        %vm672 = vweird.f32 %v525
        %vm673 = vweird.f32 %v667
        %vm674 = vmor %vm672, %vm673
        %v675 = vsel %vm674, %v667, %v671
        %v676 = vand.u32 2147483647, %v525
        %vm677 = vcmp.eq.f32.partialorder %v676, 8.507059e+37
        %v678 = vand.u32 %v525, 2147483648
        %v679 = vor.u32 1.1754944e-38, %v678
        %v680 = vsel %vm677, %v679, %v675
        %v681 = vmul.f32 1.0, %v680
        %v682 = vrcp.pop %v526
        %v683 = vmul.f32 %v526, %v682
        %v684 = vsub.f32 1.0, %v683
        %v685 = vmul.f32 %v682, %v684
        %v686 = vadd.f32 %v682, %v685
        %vm687 = vweird.f32 %v526
        %vm688 = vweird.f32 %v682
        %vm689 = vmor %vm687, %vm688
        %v690 = vsel %vm689, %v682, %v686
        %v691 = vand.u32 2147483647, %v526
        %vm692 = vcmp.eq.f32.partialorder %v691, 8.507059e+37
        %v693 = vand.u32 %v526, 2147483648
        %v694 = vor.u32 1.1754944e-38, %v693
        %v695 = vsel %vm692, %v694, %v690
        %v696 = vmul.f32 1.0, %v695
        %v697 = vrcp.pop %v527
        %v698 = vmul.f32 %v527, %v697
        %v699 = vsub.f32 1.0, %v698
        %v700 = vmul.f32 %v697, %v699
        %v701 = vadd.f32 %v697, %v700
        %vm702 = vweird.f32 %v527
        %vm703 = vweird.f32 %v697
        %vm704 = vmor %vm702, %vm703
        %v705 = vsel %vm704, %v697, %v701
        %v706 = vand.u32 2147483647, %v527
        %vm707 = vcmp.eq.f32.partialorder %v706, 8.507059e+37
        %v708 = vand.u32 %v527, 2147483648
        %v709 = vor.u32 1.1754944e-38, %v708
        %v710 = vsel %vm707, %v709, %v705
        %v711 = vmul.f32 1.0, %v710
        %v712 = vrcp.pop %v528
        %v713 = vmul.f32 %v528, %v712
        %v714 = vsub.f32 1.0, %v713
        %v715 = vmul.f32 %v712, %v714
        %v716 = vadd.f32 %v712, %v715
        %vm717 = vweird.f32 %v528
        %vm718 = vweird.f32 %v712
        %vm719 = vmor %vm717, %vm718
        %v720 = vsel %vm719, %v712, %v716
        %v721 = vand.u32 2147483647, %v528
        %vm722 = vcmp.eq.f32.partialorder %v721, 8.507059e+37
        %v723 = vand.u32 %v528, 2147483648
        %v724 = vor.u32 1.1754944e-38, %v723
        %v725 = vsel %vm722, %v724, %v720
        %v726 = vmul.f32 1.0, %v725
        %v727 = vrcp.pop %v529
        %v728 = vmul.f32 %v529, %v727
        %v729 = vsub.f32 1.0, %v728
        %v730 = vmul.f32 %v727, %v729
        %v731 = vadd.f32 %v727, %v730
        %vm732 = vweird.f32 %v529
        %vm733 = vweird.f32 %v727
        %vm734 = vmor %vm732, %vm733
        %v735 = vsel %vm734, %v727, %v731
        %v736 = vand.u32 2147483647, %v529
        %vm737 = vcmp.eq.f32.partialorder %v736, 8.507059e+37
        %v738 = vand.u32 %v529, 2147483648
        %v739 = vor.u32 1.1754944e-38, %v738
        %v740 = vsel %vm737, %v739, %v735
        %v741 = vmul.f32 1.0, %v740
        %v742 = vrcp.pop %v530
        %v743 = vmul.f32 %v530, %v742
        %v744 = vsub.f32 1.0, %v743
        %v745 = vmul.f32 %v742, %v744
        %v746 = vadd.f32 %v742, %v745
        %vm747 = vweird.f32 %v530
        %vm748 = vweird.f32 %v742
        %vm749 = vmor %vm747, %vm748
        %v750 = vsel %vm749, %v742, %v746
        %v751 = vand.u32 2147483647, %v530
        %vm752 = vcmp.eq.f32.partialorder %v751, 8.507059e+37
        %v753 = vand.u32 %v530, 2147483648
        %v754 = vor.u32 1.1754944e-38, %v753
        %v755 = vsel %vm752, %v754, %v750
        %v756 = vmul.f32 1.0, %v755
        %v757 = vrcp.pop %v531
        %v758 = vmul.f32 %v531, %v757
        %v759 = vsub.f32 1.0, %v758
        %v760 = vmul.f32 %v757, %v759
        %v761 = vadd.f32 %v757, %v760
        %vm762 = vweird.f32 %v531
        %vm763 = vweird.f32 %v757
        %vm764 = vmor %vm762, %vm763
        %v765 = vsel %vm764, %v757, %v761
        %v766 = vand.u32 2147483647, %v531
        %vm767 = vcmp.eq.f32.partialorder %v766, 8.507059e+37
        %v768 = vand.u32 %v531, 2147483648
        %v769 = vor.u32 1.1754944e-38, %v768
        %v770 = vsel %vm767, %v769, %v765
        %v771 = vmul.f32 1.0, %v770
        %v772 = vmul.f32 %v370, %v546
        %v773 = vmul.f32 %v399, %v561
        %v774 = vmul.f32 %v428, %v576
        %v775 = vmul.f32 %v457, %v591
        %v776 = vmul.f32 %v373, %v606
        %v777 = vmul.f32 %v402, %v621
        %v778 = vmul.f32 %v431, %v636
        %v779 = vmul.f32 %v460, %v651
        %v780 = vmul.f32 %v376, %v666
        %v781 = vmul.f32 %v405, %v681
        %v782 = vmul.f32 %v434, %v696
        %v783 = vmul.f32 %v463, %v711
        %v784 = vmul.f32 %v379, %v726
        %v785 = vmul.f32 %v408, %v741
        %v786 = vmul.f32 %v437, %v756
        %v787 = vmul.f32 %v466, %v771
        %788 = vset.pattern.permute.xlu0 4
        %789 = vperm.xlu0 %788, %v303
        %v790 = vpop.permute.xlu0 %789
        %792 = vset.pattern.permute.xlu0 4
        %793 = vperm.xlu0 %792, %v304
        %v794 = vpop.permute.xlu0 %793
        %796 = vset.pattern.permute.xlu0 4
        %797 = vperm.xlu0 %796, %v305
        %v798 = vpop.permute.xlu0 %797
        %800 = vset.pattern.permute.xlu0 4
        %801 = vperm.xlu0 %800, %v306
        %v802 = vpop.permute.xlu0 %801
        %v804 = vmul.f32 %v772, %v790
        %v805 = vmul.f32 %v773, %v790
        %v806 = vmul.f32 %v774, %v790
        %v807 = vmul.f32 %v775, %v790
        %v808 = vmul.f32 %v776, %v794
        %v809 = vmul.f32 %v777, %v794
        %v810 = vmul.f32 %v778, %v794
        %v811 = vmul.f32 %v779, %v794
        %v812 = vmul.f32 %v780, %v798
        %v813 = vmul.f32 %v781, %v798
        %v814 = vmul.f32 %v782, %v798
        %v815 = vmul.f32 %v783, %v798
        %v816 = vmul.f32 %v784, %v802
        %v817 = vmul.f32 %v785, %v802
        %v818 = vmul.f32 %v786, %v802
        %v819 = vmul.f32 %v787, %v802
        %820 = vrot.lane.b32.xlu0 %v772, 17
        %v821 = vpop.permute.xlu0 %820
        %822 = vrot.lane.b32.xlu0 %v776, 17
        %v823 = vpop.permute.xlu0 %822
        %824 = vrot.lane.b32.xlu0 %v780, 17
        %v825 = vpop.permute.xlu0 %824
        %826 = vrot.lane.b32.xlu0 %v784, 17
        %v827 = vpop.permute.xlu0 %826
        %828 = vrot.lane.b32.xlu0 %v773, 17
        %v829 = vpop.permute.xlu0 %828
        %830 = vrot.lane.b32.xlu0 %v777, 17
        %v831 = vpop.permute.xlu0 %830
        %832 = vrot.lane.b32.xlu0 %v781, 17
        %v833 = vpop.permute.xlu0 %832
        %834 = vrot.lane.b32.xlu0 %v785, 17
        %v835 = vpop.permute.xlu0 %834
        %836 = vrot.lane.b32.xlu0 %v774, 17
        %v837 = vpop.permute.xlu0 %836
        %838 = vrot.lane.b32.xlu0 %v778, 17
        %v839 = vpop.permute.xlu0 %838
        %840 = vrot.lane.b32.xlu0 %v782, 17
        %v841 = vpop.permute.xlu0 %840
        %842 = vrot.lane.b32.xlu0 %v786, 17
        %v843 = vpop.permute.xlu0 %842
        %844 = vrot.lane.b32.xlu0 %v775, 17
        %v845 = vpop.permute.xlu0 %844
        %846 = vrot.lane.b32.xlu0 %v779, 17
        %v847 = vpop.permute.xlu0 %846
        %848 = vrot.lane.b32.xlu0 %v783, 17
        %v849 = vpop.permute.xlu0 %848
        %850 = vrot.lane.b32.xlu0 %v787, 17
        %v851 = vpop.permute.xlu0 %850
        %v852 = vlaneseq
        %v853 = vand.u32 %v852, 127
        %vm854 = vcmp.lt.s32.totalorder %v853, 17
        %v855 = vsel %vm854, %v837, %v845
        %v856 = vsel %vm854, %v839, %v847
        %v857 = vsel %vm854, %v841, %v849
        %v858 = vsel %vm854, %v843, %v851
        %v859 = vsel %vm854, %v829, %v837
        %v860 = vsel %vm854, %v831, %v839
        %v861 = vsel %vm854, %v833, %v841
        %v862 = vsel %vm854, %v835, %v843
        %v863 = vsel %vm854, %v821, %v829
        %v864 = vsel %vm854, %v823, %v831
        %v865 = vsel %vm854, %v825, %v833
        %v866 = vsel %vm854, %v827, %v835
        %v867 = vsel %vm854, %v845, %v821
        %v868 = vsel %vm854, %v847, %v823
        %v869 = vsel %vm854, %v849, %v825
        %v870 = vsel %vm854, %v851, %v827
        %v871 = vperm.slane %v307, 0
        %v872 = vperm.slane %v308, 0
        %v873 = vperm.slane %v309, 0
        %v874 = vperm.slane %v310, 0
        %v875 = vmul.f32 %v867, %v871
        %v876 = vmul.f32 %v863, %v872
        %v877 = vmul.f32 %v859, %v873
        %v878 = vmul.f32 %v855, %v874
        %v879 = vmul.f32 %v868, %v871
        %v880 = vmul.f32 %v864, %v872
        %v881 = vmul.f32 %v860, %v873
        %v882 = vmul.f32 %v856, %v874
        %v883 = vmul.f32 %v869, %v871
        %v884 = vmul.f32 %v865, %v872
        %v885 = vmul.f32 %v861, %v873
        %v886 = vmul.f32 %v857, %v874
        %v887 = vmul.f32 %v870, %v871
        %v888 = vmul.f32 %v866, %v872
        %v889 = vmul.f32 %v862, %v873
        %v890 = vmul.f32 %v858, %v874
        %891 = vset.pattern.permute.xlu0 0
        %892 = vperm.xlu0 %891, %v303
        %v893 = vpop.permute.xlu0 %892
        %895 = vset.pattern.permute.xlu0 0
        %896 = vperm.xlu0 %895, %v304
        %v897 = vpop.permute.xlu0 %896
        %899 = vset.pattern.permute.xlu0 0
        %900 = vperm.xlu0 %899, %v305
        %v901 = vpop.permute.xlu0 %900
        %903 = vset.pattern.permute.xlu0 0
        %904 = vperm.xlu0 %903, %v306
        %v905 = vpop.permute.xlu0 %904
        %v907 = vmul.f32 %v875, %v893
        %v908 = vmul.f32 %v876, %v893
        %v909 = vmul.f32 %v877, %v893
        %v910 = vmul.f32 %v878, %v893
        %v911 = vmul.f32 %v879, %v897
        %v912 = vmul.f32 %v880, %v897
        %v913 = vmul.f32 %v881, %v897
        %v914 = vmul.f32 %v882, %v897
        %v915 = vmul.f32 %v883, %v901
        %v916 = vmul.f32 %v884, %v901
        %v917 = vmul.f32 %v885, %v901
        %v918 = vmul.f32 %v886, %v901
        %v919 = vmul.f32 %v887, %v905
        %v920 = vmul.f32 %v888, %v905
        %v921 = vmul.f32 %v889, %v905
        %v922 = vmul.f32 %v890, %v905
        %v923 = vadd.f32 %v804, %v907
        %v924 = vadd.f32 %v805, %v908
        %v925 = vadd.f32 %v806, %v909
        %v926 = vadd.f32 %v807, %v910
        %v927 = vadd.f32 %v808, %v911
        %v928 = vadd.f32 %v809, %v912
        %v929 = vadd.f32 %v810, %v913
        %v930 = vadd.f32 %v811, %v914
        %v931 = vadd.f32 %v812, %v915
        %v932 = vadd.f32 %v813, %v916
        %v933 = vadd.f32 %v814, %v917
        %v934 = vadd.f32 %v815, %v918
        %v935 = vadd.f32 %v816, %v919
        %v936 = vadd.f32 %v817, %v920
        %v937 = vadd.f32 %v818, %v921
        %v938 = vadd.f32 %v819, %v922
        %939 = vrot.lane.b32.xlu0 %v772, 16
        %v940 = vpop.permute.xlu0 %939
        %941 = vrot.lane.b32.xlu0 %v776, 16
        %v942 = vpop.permute.xlu0 %941
        %943 = vrot.lane.b32.xlu0 %v780, 16
        %v944 = vpop.permute.xlu0 %943
        %945 = vrot.lane.b32.xlu0 %v784, 16
        %v946 = vpop.permute.xlu0 %945
        %947 = vrot.lane.b32.xlu0 %v773, 16
        %v948 = vpop.permute.xlu0 %947
        %949 = vrot.lane.b32.xlu0 %v777, 16
        %v950 = vpop.permute.xlu0 %949
        %951 = vrot.lane.b32.xlu0 %v781, 16
        %v952 = vpop.permute.xlu0 %951
        %953 = vrot.lane.b32.xlu0 %v785, 16
        %v954 = vpop.permute.xlu0 %953
        %955 = vrot.lane.b32.xlu0 %v774, 16
        %v956 = vpop.permute.xlu0 %955
        %957 = vrot.lane.b32.xlu0 %v778, 16
        %v958 = vpop.permute.xlu0 %957
        %959 = vrot.lane.b32.xlu0 %v782, 16
        %v960 = vpop.permute.xlu0 %959
        %961 = vrot.lane.b32.xlu0 %v786, 16
        %v962 = vpop.permute.xlu0 %961
        %963 = vrot.lane.b32.xlu0 %v775, 16
        %v964 = vpop.permute.xlu0 %963
        %965 = vrot.lane.b32.xlu0 %v779, 16
        %v966 = vpop.permute.xlu0 %965
        %967 = vrot.lane.b32.xlu0 %v783, 16
        %v968 = vpop.permute.xlu0 %967
        %969 = vrot.lane.b32.xlu0 %v787, 16
        %v970 = vpop.permute.xlu0 %969
        %vm971 = vcmp.lt.s32.totalorder %v853, 16
        %v972 = vsel %vm971, %v956, %v964
        %v973 = vsel %vm971, %v958, %v966
        %v974 = vsel %vm971, %v960, %v968
        %v975 = vsel %vm971, %v962, %v970
        %v976 = vsel %vm971, %v948, %v956
        %v977 = vsel %vm971, %v950, %v958
        %v978 = vsel %vm971, %v952, %v960
        %v979 = vsel %vm971, %v954, %v962
        %v980 = vsel %vm971, %v940, %v948
        %v981 = vsel %vm971, %v942, %v950
        %v982 = vsel %vm971, %v944, %v952
        %v983 = vsel %vm971, %v946, %v954
        %v984 = vsel %vm971, %v964, %v940
        %v985 = vsel %vm971, %v966, %v942
        %v986 = vsel %vm971, %v968, %v944
        %v987 = vsel %vm971, %v970, %v946
        %v988 = vperm.slane %v307, 1
        %v989 = vperm.slane %v308, 1
        %v990 = vperm.slane %v309, 1
        %v991 = vperm.slane %v310, 1
        %v992 = vmul.f32 %v984, %v988
        %v993 = vmul.f32 %v980, %v989
        %v994 = vmul.f32 %v976, %v990
        %v995 = vmul.f32 %v972, %v991
        %v996 = vmul.f32 %v985, %v988
        %v997 = vmul.f32 %v981, %v989
        %v998 = vmul.f32 %v977, %v990
        %v999 = vmul.f32 %v973, %v991
        %v1000 = vmul.f32 %v986, %v988
        %v1001 = vmul.f32 %v982, %v989
        %v1002 = vmul.f32 %v978, %v990
        %v1003 = vmul.f32 %v974, %v991
        %v1004 = vmul.f32 %v987, %v988
        %v1005 = vmul.f32 %v983, %v989
        %v1006 = vmul.f32 %v979, %v990
        %v1007 = vmul.f32 %v975, %v991
        %1008 = vset.pattern.permute.xlu0 1
        %1009 = vperm.xlu0 %1008, %v303
        %v1010 = vpop.permute.xlu0 %1009
        %1012 = vset.pattern.permute.xlu0 1
        %1013 = vperm.xlu0 %1012, %v304
        %v1014 = vpop.permute.xlu0 %1013
        %1016 = vset.pattern.permute.xlu0 1
        %1017 = vperm.xlu0 %1016, %v305
        %v1018 = vpop.permute.xlu0 %1017
        %1020 = vset.pattern.permute.xlu0 1
        %1021 = vperm.xlu0 %1020, %v306
        %v1022 = vpop.permute.xlu0 %1021
        %v1024 = vmul.f32 %v992, %v1010
        %v1025 = vmul.f32 %v993, %v1010
        %v1026 = vmul.f32 %v994, %v1010
        %v1027 = vmul.f32 %v995, %v1010
        %v1028 = vmul.f32 %v996, %v1014
        %v1029 = vmul.f32 %v997, %v1014
        %v1030 = vmul.f32 %v998, %v1014
        %v1031 = vmul.f32 %v999, %v1014
        %v1032 = vmul.f32 %v1000, %v1018
        %v1033 = vmul.f32 %v1001, %v1018
        %v1034 = vmul.f32 %v1002, %v1018
        %v1035 = vmul.f32 %v1003, %v1018
        %v1036 = vmul.f32 %v1004, %v1022
        %v1037 = vmul.f32 %v1005, %v1022
        %v1038 = vmul.f32 %v1006, %v1022
        %v1039 = vmul.f32 %v1007, %v1022
        %v1040 = vadd.f32 %v923, %v1024
        %v1041 = vadd.f32 %v924, %v1025
        %v1042 = vadd.f32 %v925, %v1026
        %v1043 = vadd.f32 %v926, %v1027
        %v1044 = vadd.f32 %v927, %v1028
        %v1045 = vadd.f32 %v928, %v1029
        %v1046 = vadd.f32 %v929, %v1030
        %v1047 = vadd.f32 %v930, %v1031
        %v1048 = vadd.f32 %v931, %v1032
        %v1049 = vadd.f32 %v932, %v1033
        %v1050 = vadd.f32 %v933, %v1034
        %v1051 = vadd.f32 %v934, %v1035
        %v1052 = vadd.f32 %v935, %v1036
        %v1053 = vadd.f32 %v936, %v1037
        %v1054 = vadd.f32 %v937, %v1038
        %v1055 = vadd.f32 %v938, %v1039
        %1056 = vrot.lane.b32.xlu0 %v772, 15
        %v1057 = vpop.permute.xlu0 %1056
        %1058 = vrot.lane.b32.xlu0 %v776, 15
        %v1059 = vpop.permute.xlu0 %1058
        %1060 = vrot.lane.b32.xlu0 %v780, 15
        %v1061 = vpop.permute.xlu0 %1060
        %1062 = vrot.lane.b32.xlu0 %v784, 15
        %v1063 = vpop.permute.xlu0 %1062
        %1064 = vrot.lane.b32.xlu0 %v773, 15
        %v1065 = vpop.permute.xlu0 %1064
        %1066 = vrot.lane.b32.xlu0 %v777, 15
        %v1067 = vpop.permute.xlu0 %1066
        %1068 = vrot.lane.b32.xlu0 %v781, 15
        %v1069 = vpop.permute.xlu0 %1068
        %1070 = vrot.lane.b32.xlu0 %v785, 15
        %v1071 = vpop.permute.xlu0 %1070
        %1072 = vrot.lane.b32.xlu0 %v774, 15
        %v1073 = vpop.permute.xlu0 %1072
        %1074 = vrot.lane.b32.xlu0 %v778, 15
        %v1075 = vpop.permute.xlu0 %1074
        %1076 = vrot.lane.b32.xlu0 %v782, 15
        %v1077 = vpop.permute.xlu0 %1076
        %1078 = vrot.lane.b32.xlu0 %v786, 15
        %v1079 = vpop.permute.xlu0 %1078
        %1080 = vrot.lane.b32.xlu0 %v775, 15
        %v1081 = vpop.permute.xlu0 %1080
        %1082 = vrot.lane.b32.xlu0 %v779, 15
        %v1083 = vpop.permute.xlu0 %1082
        %1084 = vrot.lane.b32.xlu0 %v783, 15
        %v1085 = vpop.permute.xlu0 %1084
        %1086 = vrot.lane.b32.xlu0 %v787, 15
        %v1087 = vpop.permute.xlu0 %1086
        %vm1088 = vcmp.lt.s32.totalorder %v853, 15
        %v1089 = vsel %vm1088, %v1073, %v1081
        %v1090 = vsel %vm1088, %v1075, %v1083
        %v1091 = vsel %vm1088, %v1077, %v1085
        %v1092 = vsel %vm1088, %v1079, %v1087
        %v1093 = vsel %vm1088, %v1065, %v1073
        %v1094 = vsel %vm1088, %v1067, %v1075
        %v1095 = vsel %vm1088, %v1069, %v1077
        %v1096 = vsel %vm1088, %v1071, %v1079
        %v1097 = vsel %vm1088, %v1057, %v1065
        %v1098 = vsel %vm1088, %v1059, %v1067
        %v1099 = vsel %vm1088, %v1061, %v1069
        %v1100 = vsel %vm1088, %v1063, %v1071
        %v1101 = vsel %vm1088, %v1081, %v1057
        %v1102 = vsel %vm1088, %v1083, %v1059
        %v1103 = vsel %vm1088, %v1085, %v1061
        %v1104 = vsel %vm1088, %v1087, %v1063
        %v1105 = vperm.slane %v307, 2
        %v1106 = vperm.slane %v308, 2
        %v1107 = vperm.slane %v309, 2
        %v1108 = vperm.slane %v310, 2
        %v1109 = vmul.f32 %v1101, %v1105
        %v1110 = vmul.f32 %v1097, %v1106
        %v1111 = vmul.f32 %v1093, %v1107
        %v1112 = vmul.f32 %v1089, %v1108
        %v1113 = vmul.f32 %v1102, %v1105
        %v1114 = vmul.f32 %v1098, %v1106
        %v1115 = vmul.f32 %v1094, %v1107
        %v1116 = vmul.f32 %v1090, %v1108
        %v1117 = vmul.f32 %v1103, %v1105
        %v1118 = vmul.f32 %v1099, %v1106
        %v1119 = vmul.f32 %v1095, %v1107
        %v1120 = vmul.f32 %v1091, %v1108
        %v1121 = vmul.f32 %v1104, %v1105
        %v1122 = vmul.f32 %v1100, %v1106
        %v1123 = vmul.f32 %v1096, %v1107
        %v1124 = vmul.f32 %v1092, %v1108
        %1125 = vset.pattern.permute.xlu0 2
        %1126 = vperm.xlu0 %1125, %v303
        %v1127 = vpop.permute.xlu0 %1126
        %1129 = vset.pattern.permute.xlu0 2
        %1130 = vperm.xlu0 %1129, %v304
        %v1131 = vpop.permute.xlu0 %1130
        %1133 = vset.pattern.permute.xlu0 2
        %1134 = vperm.xlu0 %1133, %v305
        %v1135 = vpop.permute.xlu0 %1134
        %1137 = vset.pattern.permute.xlu0 2
        %1138 = vperm.xlu0 %1137, %v306
        %v1139 = vpop.permute.xlu0 %1138
        %v1141 = vmul.f32 %v1109, %v1127
        %v1142 = vmul.f32 %v1110, %v1127
        %v1143 = vmul.f32 %v1111, %v1127
        %v1144 = vmul.f32 %v1112, %v1127
        %v1145 = vmul.f32 %v1113, %v1131
        %v1146 = vmul.f32 %v1114, %v1131
        %v1147 = vmul.f32 %v1115, %v1131
        %v1148 = vmul.f32 %v1116, %v1131
        %v1149 = vmul.f32 %v1117, %v1135
        %v1150 = vmul.f32 %v1118, %v1135
        %v1151 = vmul.f32 %v1119, %v1135
        %v1152 = vmul.f32 %v1120, %v1135
        %v1153 = vmul.f32 %v1121, %v1139
        %v1154 = vmul.f32 %v1122, %v1139
        %v1155 = vmul.f32 %v1123, %v1139
        %v1156 = vmul.f32 %v1124, %v1139
        %v1157 = vadd.f32 %v1040, %v1141
        %v1158 = vadd.f32 %v1041, %v1142
        %v1159 = vadd.f32 %v1042, %v1143
        %v1160 = vadd.f32 %v1043, %v1144
        %v1161 = vadd.f32 %v1044, %v1145
        %v1162 = vadd.f32 %v1045, %v1146
        %v1163 = vadd.f32 %v1046, %v1147
        %v1164 = vadd.f32 %v1047, %v1148
        %v1165 = vadd.f32 %v1048, %v1149
        %v1166 = vadd.f32 %v1049, %v1150
        %v1167 = vadd.f32 %v1050, %v1151
        %v1168 = vadd.f32 %v1051, %v1152
        %v1169 = vadd.f32 %v1052, %v1153
        %v1170 = vadd.f32 %v1053, %v1154
        %v1171 = vadd.f32 %v1054, %v1155
        %v1172 = vadd.f32 %v1055, %v1156
        %1173 = vrot.lane.b32.xlu0 %v772, 1
        %v1174 = vpop.permute.xlu0 %1173
        %1175 = vrot.lane.b32.xlu0 %v776, 1
        %v1176 = vpop.permute.xlu0 %1175
        %1177 = vrot.lane.b32.xlu0 %v780, 1
        %v1178 = vpop.permute.xlu0 %1177
        %1179 = vrot.lane.b32.xlu0 %v784, 1
        %v1180 = vpop.permute.xlu0 %1179
        %1181 = vrot.lane.b32.xlu0 %v773, 1
        %v1182 = vpop.permute.xlu0 %1181
        %1183 = vrot.lane.b32.xlu0 %v777, 1
        %v1184 = vpop.permute.xlu0 %1183
        %1185 = vrot.lane.b32.xlu0 %v781, 1
        %v1186 = vpop.permute.xlu0 %1185
        %1187 = vrot.lane.b32.xlu0 %v785, 1
        %v1188 = vpop.permute.xlu0 %1187
        %1189 = vrot.lane.b32.xlu0 %v774, 1
        %v1190 = vpop.permute.xlu0 %1189
        %1191 = vrot.lane.b32.xlu0 %v778, 1
        %v1192 = vpop.permute.xlu0 %1191
        %1193 = vrot.lane.b32.xlu0 %v782, 1
        %v1194 = vpop.permute.xlu0 %1193
        %1195 = vrot.lane.b32.xlu0 %v786, 1
        %v1196 = vpop.permute.xlu0 %1195
        %1197 = vrot.lane.b32.xlu0 %v775, 1
        %v1198 = vpop.permute.xlu0 %1197
        %1199 = vrot.lane.b32.xlu0 %v779, 1
        %v1200 = vpop.permute.xlu0 %1199
        %1201 = vrot.lane.b32.xlu0 %v783, 1
        %v1202 = vpop.permute.xlu0 %1201
        %1203 = vrot.lane.b32.xlu0 %v787, 1
        %v1204 = vpop.permute.xlu0 %1203
        %vm1205 = vcmp.lt.s32.totalorder %v853, 1
        %v1206 = vsel %vm1205, %v1190, %v1198
        %v1207 = vsel %vm1205, %v1192, %v1200
        %v1208 = vsel %vm1205, %v1194, %v1202
        %v1209 = vsel %vm1205, %v1196, %v1204
        %v1210 = vsel %vm1205, %v1182, %v1190
        %v1211 = vsel %vm1205, %v1184, %v1192
        %v1212 = vsel %vm1205, %v1186, %v1194
        %v1213 = vsel %vm1205, %v1188, %v1196
        %v1214 = vsel %vm1205, %v1174, %v1182
        %v1215 = vsel %vm1205, %v1176, %v1184
        %v1216 = vsel %vm1205, %v1178, %v1186
        %v1217 = vsel %vm1205, %v1180, %v1188
        %v1218 = vsel %vm1205, %v1198, %v1174
        %v1219 = vsel %vm1205, %v1200, %v1176
        %v1220 = vsel %vm1205, %v1202, %v1178
        %v1221 = vsel %vm1205, %v1204, %v1180
        %v1222 = vperm.slane %v307, 3
        %v1223 = vperm.slane %v308, 3
        %v1224 = vperm.slane %v309, 3
        %v1225 = vperm.slane %v310, 3
        %v1226 = vmul.f32 %v1218, %v1222
        %v1227 = vmul.f32 %v1214, %v1223
        %v1228 = vmul.f32 %v1210, %v1224
        %v1229 = vmul.f32 %v1206, %v1225
        %v1230 = vmul.f32 %v1219, %v1222
        %v1231 = vmul.f32 %v1215, %v1223
        %v1232 = vmul.f32 %v1211, %v1224
        %v1233 = vmul.f32 %v1207, %v1225
        %v1234 = vmul.f32 %v1220, %v1222
        %v1235 = vmul.f32 %v1216, %v1223
        %v1236 = vmul.f32 %v1212, %v1224
        %v1237 = vmul.f32 %v1208, %v1225
        %v1238 = vmul.f32 %v1221, %v1222
        %v1239 = vmul.f32 %v1217, %v1223
        %v1240 = vmul.f32 %v1213, %v1224
        %v1241 = vmul.f32 %v1209, %v1225
        %1242 = vset.pattern.permute.xlu0 3
        %1243 = vperm.xlu0 %1242, %v303
        %v1244 = vpop.permute.xlu0 %1243
        %1246 = vset.pattern.permute.xlu0 3
        %1247 = vperm.xlu0 %1246, %v304
        %v1248 = vpop.permute.xlu0 %1247
        %1250 = vset.pattern.permute.xlu0 3
        %1251 = vperm.xlu0 %1250, %v305
        %v1252 = vpop.permute.xlu0 %1251
        %1254 = vset.pattern.permute.xlu0 3
        %1255 = vperm.xlu0 %1254, %v306
        %v1256 = vpop.permute.xlu0 %1255
        %v1258 = vmul.f32 %v1226, %v1244
        %v1259 = vmul.f32 %v1227, %v1244
        %v1260 = vmul.f32 %v1228, %v1244
        %v1261 = vmul.f32 %v1229, %v1244
        %v1262 = vmul.f32 %v1230, %v1248
        %v1263 = vmul.f32 %v1231, %v1248
        %v1264 = vmul.f32 %v1232, %v1248
        %v1265 = vmul.f32 %v1233, %v1248
        %v1266 = vmul.f32 %v1234, %v1252
        %v1267 = vmul.f32 %v1235, %v1252
        %v1268 = vmul.f32 %v1236, %v1252
        %v1269 = vmul.f32 %v1237, %v1252
        %v1270 = vmul.f32 %v1238, %v1256
        %v1271 = vmul.f32 %v1239, %v1256
        %v1272 = vmul.f32 %v1240, %v1256
        %v1273 = vmul.f32 %v1241, %v1256
        %v1274 = vadd.f32 %v1157, %v1258
        %v1275 = vadd.f32 %v1158, %v1259
        %v1276 = vadd.f32 %v1159, %v1260
        %v1277 = vadd.f32 %v1160, %v1261
        %v1278 = vadd.f32 %v1161, %v1262
        %v1279 = vadd.f32 %v1162, %v1263
        %v1280 = vadd.f32 %v1163, %v1264
        %v1281 = vadd.f32 %v1164, %v1265
        %v1282 = vadd.f32 %v1165, %v1266
        %v1283 = vadd.f32 %v1166, %v1267
        %v1284 = vadd.f32 %v1167, %v1268
        %v1285 = vadd.f32 %v1168, %v1269
        %v1286 = vadd.f32 %v1169, %v1270
        %v1287 = vadd.f32 %v1170, %v1271
        %v1288 = vadd.f32 %v1171, %v1272
        %v1289 = vadd.f32 %v1172, %v1273
        %1290 = vrot.lane.b32.xlu0 %v772, 127
        %v1291 = vpop.permute.xlu0 %1290
        %1292 = vrot.lane.b32.xlu0 %v776, 127
        %v1293 = vpop.permute.xlu0 %1292
        %1294 = vrot.lane.b32.xlu0 %v780, 127
        %v1295 = vpop.permute.xlu0 %1294
        %1296 = vrot.lane.b32.xlu0 %v784, 127
        %v1297 = vpop.permute.xlu0 %1296
        %1298 = vrot.lane.b32.xlu0 %v773, 127
        %v1299 = vpop.permute.xlu0 %1298
        %1300 = vrot.lane.b32.xlu0 %v777, 127
        %v1301 = vpop.permute.xlu0 %1300
        %1302 = vrot.lane.b32.xlu0 %v781, 127
        %v1303 = vpop.permute.xlu0 %1302
        %1304 = vrot.lane.b32.xlu0 %v785, 127
        %v1305 = vpop.permute.xlu0 %1304
        %1306 = vrot.lane.b32.xlu0 %v774, 127
        %v1307 = vpop.permute.xlu0 %1306
        %1308 = vrot.lane.b32.xlu0 %v778, 127
        %v1309 = vpop.permute.xlu0 %1308
        %1310 = vrot.lane.b32.xlu0 %v782, 127
        %v1311 = vpop.permute.xlu0 %1310
        %1312 = vrot.lane.b32.xlu0 %v786, 127
        %v1313 = vpop.permute.xlu0 %1312
        %1314 = vrot.lane.b32.xlu0 %v775, 127
        %v1315 = vpop.permute.xlu0 %1314
        %1316 = vrot.lane.b32.xlu0 %v779, 127
        %v1317 = vpop.permute.xlu0 %1316
        %1318 = vrot.lane.b32.xlu0 %v783, 127
        %v1319 = vpop.permute.xlu0 %1318
        %1320 = vrot.lane.b32.xlu0 %v787, 127
        %v1321 = vpop.permute.xlu0 %1320
        %vm1322 = vcmp.lt.s32.totalorder %v853, 127
        %v1323 = vsel %vm1322, %v1307, %v1315
        %v1324 = vsel %vm1322, %v1309, %v1317
        %v1325 = vsel %vm1322, %v1311, %v1319
        %v1326 = vsel %vm1322, %v1313, %v1321
        %v1327 = vsel %vm1322, %v1299, %v1307
        %v1328 = vsel %vm1322, %v1301, %v1309
        %v1329 = vsel %vm1322, %v1303, %v1311
        %v1330 = vsel %vm1322, %v1305, %v1313
        %v1331 = vsel %vm1322, %v1291, %v1299
        %v1332 = vsel %vm1322, %v1293, %v1301
        %v1333 = vsel %vm1322, %v1295, %v1303
        %v1334 = vsel %vm1322, %v1297, %v1305
        %v1335 = vsel %vm1322, %v1315, %v1291
        %v1336 = vsel %vm1322, %v1317, %v1293
        %v1337 = vsel %vm1322, %v1319, %v1295
        %v1338 = vsel %vm1322, %v1321, %v1297
        %v1339 = vperm.slane %v307, 4
        %v1340 = vperm.slane %v308, 4
        %v1341 = vperm.slane %v309, 4
        %v1342 = vperm.slane %v310, 4
        %v1343 = vmul.f32 %v1331, %v1339
        %v1344 = vmul.f32 %v1327, %v1340
        %v1345 = vmul.f32 %v1323, %v1341
        %v1346 = vmul.f32 %v1335, %v1342
        %v1347 = vmul.f32 %v1332, %v1339
        %v1348 = vmul.f32 %v1328, %v1340
        %v1349 = vmul.f32 %v1324, %v1341
        %v1350 = vmul.f32 %v1336, %v1342
        %v1351 = vmul.f32 %v1333, %v1339
        %v1352 = vmul.f32 %v1329, %v1340
        %v1353 = vmul.f32 %v1325, %v1341
        %v1354 = vmul.f32 %v1337, %v1342
        %v1355 = vmul.f32 %v1334, %v1339
        %v1356 = vmul.f32 %v1330, %v1340
        %v1357 = vmul.f32 %v1326, %v1341
        %v1358 = vmul.f32 %v1338, %v1342
        %1359 = vset.pattern.permute.xlu0 5
        %1360 = vperm.xlu0 %1359, %v303
        %v1361 = vpop.permute.xlu0 %1360
        %1363 = vset.pattern.permute.xlu0 5
        %1364 = vperm.xlu0 %1363, %v304
        %v1365 = vpop.permute.xlu0 %1364
        %1367 = vset.pattern.permute.xlu0 5
        %1368 = vperm.xlu0 %1367, %v305
        %v1369 = vpop.permute.xlu0 %1368
        %1371 = vset.pattern.permute.xlu0 5
        %1372 = vperm.xlu0 %1371, %v306
        %v1373 = vpop.permute.xlu0 %1372
        %v1375 = vmul.f32 %v1343, %v1361
        %v1376 = vmul.f32 %v1344, %v1361
        %v1377 = vmul.f32 %v1345, %v1361
        %v1378 = vmul.f32 %v1346, %v1361
        %v1379 = vmul.f32 %v1347, %v1365
        %v1380 = vmul.f32 %v1348, %v1365
        %v1381 = vmul.f32 %v1349, %v1365
        %v1382 = vmul.f32 %v1350, %v1365
        %v1383 = vmul.f32 %v1351, %v1369
        %v1384 = vmul.f32 %v1352, %v1369
        %v1385 = vmul.f32 %v1353, %v1369
        %v1386 = vmul.f32 %v1354, %v1369
        %v1387 = vmul.f32 %v1355, %v1373
        %v1388 = vmul.f32 %v1356, %v1373
        %v1389 = vmul.f32 %v1357, %v1373
        %v1390 = vmul.f32 %v1358, %v1373
        %v1391 = vadd.f32 %v1274, %v1375
        %v1392 = vadd.f32 %v1275, %v1376
        %v1393 = vadd.f32 %v1276, %v1377
        %v1394 = vadd.f32 %v1277, %v1378
        %v1395 = vadd.f32 %v1278, %v1379
        %v1396 = vadd.f32 %v1279, %v1380
        %v1397 = vadd.f32 %v1280, %v1381
        %v1398 = vadd.f32 %v1281, %v1382
        %v1399 = vadd.f32 %v1282, %v1383
        %v1400 = vadd.f32 %v1283, %v1384
        %v1401 = vadd.f32 %v1284, %v1385
        %v1402 = vadd.f32 %v1285, %v1386
        %v1403 = vadd.f32 %v1286, %v1387
        %v1404 = vadd.f32 %v1287, %v1388
        %v1405 = vadd.f32 %v1288, %v1389
        %v1406 = vadd.f32 %v1289, %v1390
        %1407 = vrot.lane.b32.xlu0 %v772, 113
        %v1408 = vpop.permute.xlu0 %1407
        %1409 = vrot.lane.b32.xlu0 %v776, 113
        %v1410 = vpop.permute.xlu0 %1409
        %1411 = vrot.lane.b32.xlu0 %v780, 113
        %v1412 = vpop.permute.xlu0 %1411
        %1413 = vrot.lane.b32.xlu0 %v784, 113
        %v1414 = vpop.permute.xlu0 %1413
        %1415 = vrot.lane.b32.xlu0 %v773, 113
        %v1416 = vpop.permute.xlu0 %1415
        %1417 = vrot.lane.b32.xlu0 %v777, 113
        %v1418 = vpop.permute.xlu0 %1417
        %1419 = vrot.lane.b32.xlu0 %v781, 113
        %v1420 = vpop.permute.xlu0 %1419
        %1421 = vrot.lane.b32.xlu0 %v785, 113
        %v1422 = vpop.permute.xlu0 %1421
        %1423 = vrot.lane.b32.xlu0 %v774, 113
        %v1424 = vpop.permute.xlu0 %1423
        %1425 = vrot.lane.b32.xlu0 %v778, 113
        %v1426 = vpop.permute.xlu0 %1425
        %1427 = vrot.lane.b32.xlu0 %v782, 113
        %v1428 = vpop.permute.xlu0 %1427
        %1429 = vrot.lane.b32.xlu0 %v786, 113
        %v1430 = vpop.permute.xlu0 %1429
        %1431 = vrot.lane.b32.xlu0 %v775, 113
        %v1432 = vpop.permute.xlu0 %1431
        %1433 = vrot.lane.b32.xlu0 %v779, 113
        %v1434 = vpop.permute.xlu0 %1433
        %1435 = vrot.lane.b32.xlu0 %v783, 113
        %v1436 = vpop.permute.xlu0 %1435
        %1437 = vrot.lane.b32.xlu0 %v787, 113
        %v1438 = vpop.permute.xlu0 %1437
        %vm1439 = vcmp.lt.s32.totalorder %v853, 113
        %v1440 = vsel %vm1439, %v1424, %v1432
        %v1441 = vsel %vm1439, %v1426, %v1434
        %v1442 = vsel %vm1439, %v1428, %v1436
        %v1443 = vsel %vm1439, %v1430, %v1438
        %v1444 = vsel %vm1439, %v1416, %v1424
        %v1445 = vsel %vm1439, %v1418, %v1426
        %v1446 = vsel %vm1439, %v1420, %v1428
        %v1447 = vsel %vm1439, %v1422, %v1430
        %v1448 = vsel %vm1439, %v1408, %v1416
        %v1449 = vsel %vm1439, %v1410, %v1418
        %v1450 = vsel %vm1439, %v1412, %v1420
        %v1451 = vsel %vm1439, %v1414, %v1422
        %v1452 = vsel %vm1439, %v1432, %v1408
        %v1453 = vsel %vm1439, %v1434, %v1410
        %v1454 = vsel %vm1439, %v1436, %v1412
        %v1455 = vsel %vm1439, %v1438, %v1414
        %v1456 = vperm.slane %v307, 5
        %v1457 = vperm.slane %v308, 5
        %v1458 = vperm.slane %v309, 5
        %v1459 = vperm.slane %v310, 5
        %v1460 = vmul.f32 %v1448, %v1456
        %v1461 = vmul.f32 %v1444, %v1457
        %v1462 = vmul.f32 %v1440, %v1458
        %v1463 = vmul.f32 %v1452, %v1459
        %v1464 = vmul.f32 %v1449, %v1456
        %v1465 = vmul.f32 %v1445, %v1457
        %v1466 = vmul.f32 %v1441, %v1458
        %v1467 = vmul.f32 %v1453, %v1459
        %v1468 = vmul.f32 %v1450, %v1456
        %v1469 = vmul.f32 %v1446, %v1457
        %v1470 = vmul.f32 %v1442, %v1458
        %v1471 = vmul.f32 %v1454, %v1459
        %v1472 = vmul.f32 %v1451, %v1456
        %v1473 = vmul.f32 %v1447, %v1457
        %v1474 = vmul.f32 %v1443, %v1458
        %v1475 = vmul.f32 %v1455, %v1459
        %1476 = vset.pattern.permute.xlu0 6
        %1477 = vperm.xlu0 %1476, %v303
        %v1478 = vpop.permute.xlu0 %1477
        %1480 = vset.pattern.permute.xlu0 6
        %1481 = vperm.xlu0 %1480, %v304
        %v1482 = vpop.permute.xlu0 %1481
        %1484 = vset.pattern.permute.xlu0 6
        %1485 = vperm.xlu0 %1484, %v305
        %v1486 = vpop.permute.xlu0 %1485
        %1488 = vset.pattern.permute.xlu0 6
        %1489 = vperm.xlu0 %1488, %v306
        %v1490 = vpop.permute.xlu0 %1489
        %v1492 = vmul.f32 %v1460, %v1478
        %v1493 = vmul.f32 %v1461, %v1478
        %v1494 = vmul.f32 %v1462, %v1478
        %v1495 = vmul.f32 %v1463, %v1478
        %v1496 = vmul.f32 %v1464, %v1482
        %v1497 = vmul.f32 %v1465, %v1482
        %v1498 = vmul.f32 %v1466, %v1482
        %v1499 = vmul.f32 %v1467, %v1482
        %v1500 = vmul.f32 %v1468, %v1486
        %v1501 = vmul.f32 %v1469, %v1486
        %v1502 = vmul.f32 %v1470, %v1486
        %v1503 = vmul.f32 %v1471, %v1486
        %v1504 = vmul.f32 %v1472, %v1490
        %v1505 = vmul.f32 %v1473, %v1490
        %v1506 = vmul.f32 %v1474, %v1490
        %v1507 = vmul.f32 %v1475, %v1490
        %v1508 = vadd.f32 %v1391, %v1492
        %v1509 = vadd.f32 %v1392, %v1493
        %v1510 = vadd.f32 %v1393, %v1494
        %v1511 = vadd.f32 %v1394, %v1495
        %v1512 = vadd.f32 %v1395, %v1496
        %v1513 = vadd.f32 %v1396, %v1497
        %v1514 = vadd.f32 %v1397, %v1498
        %v1515 = vadd.f32 %v1398, %v1499
        %v1516 = vadd.f32 %v1399, %v1500
        %v1517 = vadd.f32 %v1400, %v1501
        %v1518 = vadd.f32 %v1401, %v1502
        %v1519 = vadd.f32 %v1402, %v1503
        %v1520 = vadd.f32 %v1403, %v1504
        %v1521 = vadd.f32 %v1404, %v1505
        %v1522 = vadd.f32 %v1405, %v1506
        %v1523 = vadd.f32 %v1406, %v1507
        %1524 = vrot.lane.b32.xlu0 %v772, 112
        %v1525 = vpop.permute.xlu0 %1524
        %1526 = vrot.lane.b32.xlu0 %v776, 112
        %v1527 = vpop.permute.xlu0 %1526
        %1528 = vrot.lane.b32.xlu0 %v780, 112
        %v1529 = vpop.permute.xlu0 %1528
        %1530 = vrot.lane.b32.xlu0 %v784, 112
        %v1531 = vpop.permute.xlu0 %1530
        %1532 = vrot.lane.b32.xlu0 %v773, 112
        %v1533 = vpop.permute.xlu0 %1532
        %1534 = vrot.lane.b32.xlu0 %v777, 112
        %v1535 = vpop.permute.xlu0 %1534
        %1536 = vrot.lane.b32.xlu0 %v781, 112
        %v1537 = vpop.permute.xlu0 %1536
        %1538 = vrot.lane.b32.xlu0 %v785, 112
        %v1539 = vpop.permute.xlu0 %1538
        %1540 = vrot.lane.b32.xlu0 %v774, 112
        %v1541 = vpop.permute.xlu0 %1540
        %1542 = vrot.lane.b32.xlu0 %v778, 112
        %v1543 = vpop.permute.xlu0 %1542
        %1544 = vrot.lane.b32.xlu0 %v782, 112
        %v1545 = vpop.permute.xlu0 %1544
        %1546 = vrot.lane.b32.xlu0 %v786, 112
        %v1547 = vpop.permute.xlu0 %1546
        %1548 = vrot.lane.b32.xlu0 %v775, 112
        %v1549 = vpop.permute.xlu0 %1548
        %1550 = vrot.lane.b32.xlu0 %v779, 112
        %v1551 = vpop.permute.xlu0 %1550
        %1552 = vrot.lane.b32.xlu0 %v783, 112
        %v1553 = vpop.permute.xlu0 %1552
        %1554 = vrot.lane.b32.xlu0 %v787, 112
        %v1555 = vpop.permute.xlu0 %1554
        %vm1556 = vcmp.lt.s32.totalorder %v853, 112
        %v1557 = vsel %vm1556, %v1541, %v1549
        %v1558 = vsel %vm1556, %v1543, %v1551
        %v1559 = vsel %vm1556, %v1545, %v1553
        %v1560 = vsel %vm1556, %v1547, %v1555
        %v1561 = vsel %vm1556, %v1533, %v1541
        %v1562 = vsel %vm1556, %v1535, %v1543
        %v1563 = vsel %vm1556, %v1537, %v1545
        %v1564 = vsel %vm1556, %v1539, %v1547
        %v1565 = vsel %vm1556, %v1525, %v1533
        %v1566 = vsel %vm1556, %v1527, %v1535
        %v1567 = vsel %vm1556, %v1529, %v1537
        %v1568 = vsel %vm1556, %v1531, %v1539
        %v1569 = vsel %vm1556, %v1549, %v1525
        %v1570 = vsel %vm1556, %v1551, %v1527
        %v1571 = vsel %vm1556, %v1553, %v1529
        %v1572 = vsel %vm1556, %v1555, %v1531
        %v1573 = vperm.slane %v307, 6
        %v1574 = vperm.slane %v308, 6
        %v1575 = vperm.slane %v309, 6
        %v1576 = vperm.slane %v310, 6
        %v1577 = vmul.f32 %v1565, %v1573
        %v1578 = vmul.f32 %v1561, %v1574
        %v1579 = vmul.f32 %v1557, %v1575
        %v1580 = vmul.f32 %v1569, %v1576
        %v1581 = vmul.f32 %v1566, %v1573
        %v1582 = vmul.f32 %v1562, %v1574
        %v1583 = vmul.f32 %v1558, %v1575
        %v1584 = vmul.f32 %v1570, %v1576
        %v1585 = vmul.f32 %v1567, %v1573
        %v1586 = vmul.f32 %v1563, %v1574
        %v1587 = vmul.f32 %v1559, %v1575
        %v1588 = vmul.f32 %v1571, %v1576
        %v1589 = vmul.f32 %v1568, %v1573
        %v1590 = vmul.f32 %v1564, %v1574
        %v1591 = vmul.f32 %v1560, %v1575
        %v1592 = vmul.f32 %v1572, %v1576
        %1593 = vset.pattern.permute.xlu0 7
        %1594 = vperm.xlu0 %1593, %v303
        %v1595 = vpop.permute.xlu0 %1594
        %1597 = vset.pattern.permute.xlu0 7
        %1598 = vperm.xlu0 %1597, %v304
        %v1599 = vpop.permute.xlu0 %1598
        %1601 = vset.pattern.permute.xlu0 7
        %1602 = vperm.xlu0 %1601, %v305
        %v1603 = vpop.permute.xlu0 %1602
        %1605 = vset.pattern.permute.xlu0 7
        %1606 = vperm.xlu0 %1605, %v306
        %v1607 = vpop.permute.xlu0 %1606
        %v1609 = vmul.f32 %v1577, %v1595
        %v1610 = vmul.f32 %v1578, %v1595
        %v1611 = vmul.f32 %v1579, %v1595
        %v1612 = vmul.f32 %v1580, %v1595
        %v1613 = vmul.f32 %v1581, %v1599
        %v1614 = vmul.f32 %v1582, %v1599
        %v1615 = vmul.f32 %v1583, %v1599
        %v1616 = vmul.f32 %v1584, %v1599
        %v1617 = vmul.f32 %v1585, %v1603
        %v1618 = vmul.f32 %v1586, %v1603
        %v1619 = vmul.f32 %v1587, %v1603
        %v1620 = vmul.f32 %v1588, %v1603
        %v1621 = vmul.f32 %v1589, %v1607
        %v1622 = vmul.f32 %v1590, %v1607
        %v1623 = vmul.f32 %v1591, %v1607
        %v1624 = vmul.f32 %v1592, %v1607
        %v1625 = vadd.f32 %v1508, %v1609
        %v1626 = vadd.f32 %v1509, %v1610
        %v1627 = vadd.f32 %v1510, %v1611
        %v1628 = vadd.f32 %v1511, %v1612
        %v1629 = vadd.f32 %v1512, %v1613
        %v1630 = vadd.f32 %v1513, %v1614
        %v1631 = vadd.f32 %v1514, %v1615
        %v1632 = vadd.f32 %v1515, %v1616
        %v1633 = vadd.f32 %v1516, %v1617
        %v1634 = vadd.f32 %v1517, %v1618
        %v1635 = vadd.f32 %v1518, %v1619
        %v1636 = vadd.f32 %v1519, %v1620
        %v1637 = vadd.f32 %v1520, %v1621
        %v1638 = vadd.f32 %v1521, %v1622
        %v1639 = vadd.f32 %v1522, %v1623
        %v1640 = vadd.f32 %v1523, %v1624
        %1641 = vrot.lane.b32.xlu0 %v772, 111
        %v1642 = vpop.permute.xlu0 %1641
        %1643 = vrot.lane.b32.xlu0 %v776, 111
        %v1644 = vpop.permute.xlu0 %1643
        %1645 = vrot.lane.b32.xlu0 %v780, 111
        %v1646 = vpop.permute.xlu0 %1645
        %1647 = vrot.lane.b32.xlu0 %v784, 111
        %v1648 = vpop.permute.xlu0 %1647
        %1649 = vrot.lane.b32.xlu0 %v773, 111
        %v1650 = vpop.permute.xlu0 %1649
        %1651 = vrot.lane.b32.xlu0 %v777, 111
        %v1652 = vpop.permute.xlu0 %1651
        %1653 = vrot.lane.b32.xlu0 %v781, 111
        %v1654 = vpop.permute.xlu0 %1653
        %1655 = vrot.lane.b32.xlu0 %v785, 111
        %v1656 = vpop.permute.xlu0 %1655
        %1657 = vrot.lane.b32.xlu0 %v774, 111
        %v1658 = vpop.permute.xlu0 %1657
        %1659 = vrot.lane.b32.xlu0 %v778, 111
        %v1660 = vpop.permute.xlu0 %1659
        %1661 = vrot.lane.b32.xlu0 %v782, 111
        %v1662 = vpop.permute.xlu0 %1661
        %1663 = vrot.lane.b32.xlu0 %v786, 111
        %v1664 = vpop.permute.xlu0 %1663
        %1665 = vrot.lane.b32.xlu0 %v775, 111
        %v1666 = vpop.permute.xlu0 %1665
        %1667 = vrot.lane.b32.xlu0 %v779, 111
        %v1668 = vpop.permute.xlu0 %1667
        %1669 = vrot.lane.b32.xlu0 %v783, 111
        %v1670 = vpop.permute.xlu0 %1669
        %1671 = vrot.lane.b32.xlu0 %v787, 111
        %v1672 = vpop.permute.xlu0 %1671
        %vm1673 = vcmp.lt.s32.totalorder %v853, 111
        %v1674 = vsel %vm1673, %v1658, %v1666
        %v1675 = vsel %vm1673, %v1660, %v1668
        %v1676 = vsel %vm1673, %v1662, %v1670
        %v1677 = vsel %vm1673, %v1664, %v1672
        %v1678 = vsel %vm1673, %v1650, %v1658
        %v1679 = vsel %vm1673, %v1652, %v1660
        %v1680 = vsel %vm1673, %v1654, %v1662
        %v1681 = vsel %vm1673, %v1656, %v1664
        %v1682 = vsel %vm1673, %v1642, %v1650
        %v1683 = vsel %vm1673, %v1644, %v1652
        %v1684 = vsel %vm1673, %v1646, %v1654
        %v1685 = vsel %vm1673, %v1648, %v1656
        %v1686 = vsel %vm1673, %v1666, %v1642
        %v1687 = vsel %vm1673, %v1668, %v1644
        %v1688 = vsel %vm1673, %v1670, %v1646
        %v1689 = vsel %vm1673, %v1672, %v1648
        %v1690 = vperm.slane %v307, 7
        %v1691 = vperm.slane %v308, 7
        %v1692 = vperm.slane %v309, 7
        %v1693 = vperm.slane %v310, 7
        %v1694 = vmul.f32 %v1682, %v1690
        %v1695 = vmul.f32 %v1678, %v1691
        %v1696 = vmul.f32 %v1674, %v1692
        %v1697 = vmul.f32 %v1686, %v1693
        %v1698 = vmul.f32 %v1683, %v1690
        %v1699 = vmul.f32 %v1679, %v1691
        %v1700 = vmul.f32 %v1675, %v1692
        %v1701 = vmul.f32 %v1687, %v1693
        %v1702 = vmul.f32 %v1684, %v1690
        %v1703 = vmul.f32 %v1680, %v1691
        %v1704 = vmul.f32 %v1676, %v1692
        %v1705 = vmul.f32 %v1688, %v1693
        %v1706 = vmul.f32 %v1685, %v1690
        %v1707 = vmul.f32 %v1681, %v1691
        %v1708 = vmul.f32 %v1677, %v1692
        %v1709 = vmul.f32 %v1689, %v1693
        %1710 = vset.pattern.permute.xlu0 8
        %1711 = vperm.xlu0 %1710, %v303
        %v1712 = vpop.permute.xlu0 %1711
        %1714 = vset.pattern.permute.xlu0 8
        %1715 = vperm.xlu0 %1714, %v304
        %v1716 = vpop.permute.xlu0 %1715
        %1718 = vset.pattern.permute.xlu0 8
        %1719 = vperm.xlu0 %1718, %v305
        %v1720 = vpop.permute.xlu0 %1719
        %1722 = vset.pattern.permute.xlu0 8
        %1723 = vperm.xlu0 %1722, %v306
        %v1724 = vpop.permute.xlu0 %1723
        %v1726 = vmul.f32 %v1694, %v1712
        %v1727 = vmul.f32 %v1695, %v1712
        %v1728 = vmul.f32 %v1696, %v1712
        %v1729 = vmul.f32 %v1697, %v1712
        %v1730 = vmul.f32 %v1698, %v1716
        %v1731 = vmul.f32 %v1699, %v1716
        %v1732 = vmul.f32 %v1700, %v1716
        %v1733 = vmul.f32 %v1701, %v1716
        %v1734 = vmul.f32 %v1702, %v1720
        %v1735 = vmul.f32 %v1703, %v1720
        %v1736 = vmul.f32 %v1704, %v1720
        %v1737 = vmul.f32 %v1705, %v1720
        %v1738 = vmul.f32 %v1706, %v1724
        %v1739 = vmul.f32 %v1707, %v1724
        %v1740 = vmul.f32 %v1708, %v1724
        %v1741 = vmul.f32 %v1709, %v1724
        %v1742 = vadd.f32 %v1625, %v1726
        %v1743 = vadd.f32 %v1626, %v1727
        %v1744 = vadd.f32 %v1627, %v1728
        %v1745 = vadd.f32 %v1628, %v1729
        %v1746 = vadd.f32 %v1629, %v1730
        %v1747 = vadd.f32 %v1630, %v1731
        %v1748 = vadd.f32 %v1631, %v1732
        %v1749 = vadd.f32 %v1632, %v1733
        %v1750 = vadd.f32 %v1633, %v1734
        %v1751 = vadd.f32 %v1634, %v1735
        %v1752 = vadd.f32 %v1635, %v1736
        %v1753 = vadd.f32 %v1636, %v1737
        %v1754 = vadd.f32 %v1637, %v1738
        %v1755 = vadd.f32 %v1638, %v1739
        %v1756 = vadd.f32 %v1639, %v1740
        %v1757 = vadd.f32 %v1640, %v1741
        %1758 = vset.pattern.permute.xlu0 10
        %1759 = vperm.xlu0 %1758, %v303
        %v1760 = vpop.permute.xlu0 %1759
        %1762 = vset.pattern.permute.xlu0 10
        %1763 = vperm.xlu0 %1762, %v304
        %v1764 = vpop.permute.xlu0 %1763
        %1766 = vset.pattern.permute.xlu0 10
        %1767 = vperm.xlu0 %1766, %v305
        %v1768 = vpop.permute.xlu0 %1767
        %1770 = vset.pattern.permute.xlu0 10
        %1771 = vperm.xlu0 %1770, %v306
        %v1772 = vpop.permute.xlu0 %1771
        %v1774 = vadd.f32 %v1742, %v1760
        %v1775 = vadd.f32 %v1743, %v1760
        %v1776 = vadd.f32 %v1744, %v1760
        %v1777 = vadd.f32 %v1745, %v1760
        %v1778 = vadd.f32 %v1746, %v1764
        %v1779 = vadd.f32 %v1747, %v1764
        %v1780 = vadd.f32 %v1748, %v1764
        %v1781 = vadd.f32 %v1749, %v1764
        %v1782 = vadd.f32 %v1750, %v1768
        %v1783 = vadd.f32 %v1751, %v1768
        %v1784 = vadd.f32 %v1752, %v1768
        %v1785 = vadd.f32 %v1753, %v1768
        %v1786 = vadd.f32 %v1754, %v1772
        %v1787 = vadd.f32 %v1755, %v1772
        %v1788 = vadd.f32 %v1756, %v1772
        %v1789 = vadd.f32 %v1757, %v1772
        %v1790 = vxor.u32 %v1774, 2147483648
        %v1791 = vxor.u32 %v1775, 2147483648
        %v1792 = vxor.u32 %v1776, 2147483648
        %v1793 = vxor.u32 %v1777, 2147483648
        %v1794 = vxor.u32 %v1778, 2147483648
        %v1795 = vxor.u32 %v1779, 2147483648
        %v1796 = vxor.u32 %v1780, 2147483648
        %v1797 = vxor.u32 %v1781, 2147483648
        %v1798 = vxor.u32 %v1782, 2147483648
        %v1799 = vxor.u32 %v1783, 2147483648
        %v1800 = vxor.u32 %v1784, 2147483648
        %v1801 = vxor.u32 %v1785, 2147483648
        %v1802 = vxor.u32 %v1786, 2147483648
        %v1803 = vxor.u32 %v1787, 2147483648
        %v1804 = vxor.u32 %v1788, 2147483648
        %v1805 = vxor.u32 %v1789, 2147483648
        %v1806 = vmul.f32 %v1790, 1.442695
        %v1807 = vpow.pop %v1806
        %v1808 = vmul.f32 %v1791, 1.442695
        %v1809 = vpow.pop %v1808
        %v1810 = vmul.f32 %v1792, 1.442695
        %v1811 = vpow.pop %v1810
        %v1812 = vmul.f32 %v1793, 1.442695
        %v1813 = vpow.pop %v1812
        %v1814 = vmul.f32 %v1794, 1.442695
        %v1815 = vpow.pop %v1814
        %v1816 = vmul.f32 %v1795, 1.442695
        %v1817 = vpow.pop %v1816
        %v1818 = vmul.f32 %v1796, 1.442695
        %v1819 = vpow.pop %v1818
        %v1820 = vmul.f32 %v1797, 1.442695
        %v1821 = vpow.pop %v1820
        %v1822 = vmul.f32 %v1798, 1.442695
        %v1823 = vpow.pop %v1822
        %v1824 = vmul.f32 %v1799, 1.442695
        %v1825 = vpow.pop %v1824
        %v1826 = vmul.f32 %v1800, 1.442695
        %v1827 = vpow.pop %v1826
        %v1828 = vmul.f32 %v1801, 1.442695
        %v1829 = vpow.pop %v1828
        %v1830 = vmul.f32 %v1802, 1.442695
        %v1831 = vpow.pop %v1830
        %v1832 = vmul.f32 %v1803, 1.442695
        %v1833 = vpow.pop %v1832
        %v1834 = vmul.f32 %v1804, 1.442695
        %v1835 = vpow.pop %v1834
        %v1836 = vmul.f32 %v1805, 1.442695
        %v1837 = vpow.pop %v1836
        %v1838 = vadd.f32 %v1807, 1.0
        %v1839 = vadd.f32 %v1809, 1.0
        %v1840 = vadd.f32 %v1811, 1.0
        %v1841 = vadd.f32 %v1813, 1.0
        %v1842 = vadd.f32 %v1815, 1.0
        %v1843 = vadd.f32 %v1817, 1.0
        %v1844 = vadd.f32 %v1819, 1.0
        %v1845 = vadd.f32 %v1821, 1.0
        %v1846 = vadd.f32 %v1823, 1.0
        %v1847 = vadd.f32 %v1825, 1.0
        %v1848 = vadd.f32 %v1827, 1.0
        %v1849 = vadd.f32 %v1829, 1.0
        %v1850 = vadd.f32 %v1831, 1.0
        %v1851 = vadd.f32 %v1833, 1.0
        %v1852 = vadd.f32 %v1835, 1.0
        %v1853 = vadd.f32 %v1837, 1.0
        %v1854 = vrcp.pop %v1838
        %v1855 = vmul.f32 %v1838, %v1854
        %v1856 = vsub.f32 1.0, %v1855
        %v1857 = vmul.f32 %v1854, %v1856
        %v1858 = vadd.f32 %v1854, %v1857
        %vm1859 = vweird.f32 %v1838
        %vm1860 = vweird.f32 %v1854
        %vm1861 = vmor %vm1859, %vm1860
        %v1862 = vsel %vm1861, %v1854, %v1858
        %v1863 = vand.u32 2147483647, %v1838
        %vm1864 = vcmp.eq.f32.partialorder %v1863, 8.507059e+37
        %v1865 = vand.u32 %v1838, 2147483648
        %v1866 = vor.u32 1.1754944e-38, %v1865
        %v1867 = vsel %vm1864, %v1866, %v1862
        %v1868 = vmul.f32 1.0, %v1867
        %v1869 = vrcp.pop %v1839
        %v1870 = vmul.f32 %v1839, %v1869
        %v1871 = vsub.f32 1.0, %v1870
        %v1872 = vmul.f32 %v1869, %v1871
        %v1873 = vadd.f32 %v1869, %v1872
        %vm1874 = vweird.f32 %v1839
        %vm1875 = vweird.f32 %v1869
        %vm1876 = vmor %vm1874, %vm1875
        %v1877 = vsel %vm1876, %v1869, %v1873
        %v1878 = vand.u32 2147483647, %v1839
        %vm1879 = vcmp.eq.f32.partialorder %v1878, 8.507059e+37
        %v1880 = vand.u32 %v1839, 2147483648
        %v1881 = vor.u32 1.1754944e-38, %v1880
        %v1882 = vsel %vm1879, %v1881, %v1877
        %v1883 = vmul.f32 1.0, %v1882
        %v1884 = vrcp.pop %v1840
        %v1885 = vmul.f32 %v1840, %v1884
        %v1886 = vsub.f32 1.0, %v1885
        %v1887 = vmul.f32 %v1884, %v1886
        %v1888 = vadd.f32 %v1884, %v1887
        %vm1889 = vweird.f32 %v1840
        %vm1890 = vweird.f32 %v1884
        %vm1891 = vmor %vm1889, %vm1890
        %v1892 = vsel %vm1891, %v1884, %v1888
        %v1893 = vand.u32 2147483647, %v1840
        %vm1894 = vcmp.eq.f32.partialorder %v1893, 8.507059e+37
        %v1895 = vand.u32 %v1840, 2147483648
        %v1896 = vor.u32 1.1754944e-38, %v1895
        %v1897 = vsel %vm1894, %v1896, %v1892
        %v1898 = vmul.f32 1.0, %v1897
        %v1899 = vrcp.pop %v1841
        %v1900 = vmul.f32 %v1841, %v1899
        %v1901 = vsub.f32 1.0, %v1900
        %v1902 = vmul.f32 %v1899, %v1901
        %v1903 = vadd.f32 %v1899, %v1902
        %vm1904 = vweird.f32 %v1841
        %vm1905 = vweird.f32 %v1899
        %vm1906 = vmor %vm1904, %vm1905
        %v1907 = vsel %vm1906, %v1899, %v1903
        %v1908 = vand.u32 2147483647, %v1841
        %vm1909 = vcmp.eq.f32.partialorder %v1908, 8.507059e+37
        %v1910 = vand.u32 %v1841, 2147483648
        %v1911 = vor.u32 1.1754944e-38, %v1910
        %v1912 = vsel %vm1909, %v1911, %v1907
        %v1913 = vmul.f32 1.0, %v1912
        %v1914 = vrcp.pop %v1842
        %v1915 = vmul.f32 %v1842, %v1914
        %v1916 = vsub.f32 1.0, %v1915
        %v1917 = vmul.f32 %v1914, %v1916
        %v1918 = vadd.f32 %v1914, %v1917
        %vm1919 = vweird.f32 %v1842
        %vm1920 = vweird.f32 %v1914
        %vm1921 = vmor %vm1919, %vm1920
        %v1922 = vsel %vm1921, %v1914, %v1918
        %v1923 = vand.u32 2147483647, %v1842
        %vm1924 = vcmp.eq.f32.partialorder %v1923, 8.507059e+37
        %v1925 = vand.u32 %v1842, 2147483648
        %v1926 = vor.u32 1.1754944e-38, %v1925
        %v1927 = vsel %vm1924, %v1926, %v1922
        %v1928 = vmul.f32 1.0, %v1927
        %v1929 = vrcp.pop %v1843
        %v1930 = vmul.f32 %v1843, %v1929
        %v1931 = vsub.f32 1.0, %v1930
        %v1932 = vmul.f32 %v1929, %v1931
        %v1933 = vadd.f32 %v1929, %v1932
        %vm1934 = vweird.f32 %v1843
        %vm1935 = vweird.f32 %v1929
        %vm1936 = vmor %vm1934, %vm1935
        %v1937 = vsel %vm1936, %v1929, %v1933
        %v1938 = vand.u32 2147483647, %v1843
        %vm1939 = vcmp.eq.f32.partialorder %v1938, 8.507059e+37
        %v1940 = vand.u32 %v1843, 2147483648
        %v1941 = vor.u32 1.1754944e-38, %v1940
        %v1942 = vsel %vm1939, %v1941, %v1937
        %v1943 = vmul.f32 1.0, %v1942
        %v1944 = vrcp.pop %v1844
        %v1945 = vmul.f32 %v1844, %v1944
        %v1946 = vsub.f32 1.0, %v1945
        %v1947 = vmul.f32 %v1944, %v1946
        %v1948 = vadd.f32 %v1944, %v1947
        %vm1949 = vweird.f32 %v1844
        %vm1950 = vweird.f32 %v1944
        %vm1951 = vmor %vm1949, %vm1950
        %v1952 = vsel %vm1951, %v1944, %v1948
        %v1953 = vand.u32 2147483647, %v1844
        %vm1954 = vcmp.eq.f32.partialorder %v1953, 8.507059e+37
        %v1955 = vand.u32 %v1844, 2147483648
        %v1956 = vor.u32 1.1754944e-38, %v1955
        %v1957 = vsel %vm1954, %v1956, %v1952
        %v1958 = vmul.f32 1.0, %v1957
        %v1959 = vrcp.pop %v1845
        %v1960 = vmul.f32 %v1845, %v1959
        %v1961 = vsub.f32 1.0, %v1960
        %v1962 = vmul.f32 %v1959, %v1961
        %v1963 = vadd.f32 %v1959, %v1962
        %vm1964 = vweird.f32 %v1845
        %vm1965 = vweird.f32 %v1959
        %vm1966 = vmor %vm1964, %vm1965
        %v1967 = vsel %vm1966, %v1959, %v1963
        %v1968 = vand.u32 2147483647, %v1845
        %vm1969 = vcmp.eq.f32.partialorder %v1968, 8.507059e+37
        %v1970 = vand.u32 %v1845, 2147483648
        %v1971 = vor.u32 1.1754944e-38, %v1970
        %v1972 = vsel %vm1969, %v1971, %v1967
        %v1973 = vmul.f32 1.0, %v1972
        %v1974 = vrcp.pop %v1846
        %v1975 = vmul.f32 %v1846, %v1974
        %v1976 = vsub.f32 1.0, %v1975
        %v1977 = vmul.f32 %v1974, %v1976
        %v1978 = vadd.f32 %v1974, %v1977
        %vm1979 = vweird.f32 %v1846
        %vm1980 = vweird.f32 %v1974
        %vm1981 = vmor %vm1979, %vm1980
        %v1982 = vsel %vm1981, %v1974, %v1978
        %v1983 = vand.u32 2147483647, %v1846
        %vm1984 = vcmp.eq.f32.partialorder %v1983, 8.507059e+37
        %v1985 = vand.u32 %v1846, 2147483648
        %v1986 = vor.u32 1.1754944e-38, %v1985
        %v1987 = vsel %vm1984, %v1986, %v1982
        %v1988 = vmul.f32 1.0, %v1987
        %v1989 = vrcp.pop %v1847
        %v1990 = vmul.f32 %v1847, %v1989
        %v1991 = vsub.f32 1.0, %v1990
        %v1992 = vmul.f32 %v1989, %v1991
        %v1993 = vadd.f32 %v1989, %v1992
        %vm1994 = vweird.f32 %v1847
        %vm1995 = vweird.f32 %v1989
        %vm1996 = vmor %vm1994, %vm1995
        %v1997 = vsel %vm1996, %v1989, %v1993
        %v1998 = vand.u32 2147483647, %v1847
        %vm1999 = vcmp.eq.f32.partialorder %v1998, 8.507059e+37
        %v2000 = vand.u32 %v1847, 2147483648
        %v2001 = vor.u32 1.1754944e-38, %v2000
        %v2002 = vsel %vm1999, %v2001, %v1997
        %v2003 = vmul.f32 1.0, %v2002
        %v2004 = vrcp.pop %v1848
        %v2005 = vmul.f32 %v1848, %v2004
        %v2006 = vsub.f32 1.0, %v2005
        %v2007 = vmul.f32 %v2004, %v2006
        %v2008 = vadd.f32 %v2004, %v2007
        %vm2009 = vweird.f32 %v1848
        %vm2010 = vweird.f32 %v2004
        %vm2011 = vmor %vm2009, %vm2010
        %v2012 = vsel %vm2011, %v2004, %v2008
        %v2013 = vand.u32 2147483647, %v1848
        %vm2014 = vcmp.eq.f32.partialorder %v2013, 8.507059e+37
        %v2015 = vand.u32 %v1848, 2147483648
        %v2016 = vor.u32 1.1754944e-38, %v2015
        %v2017 = vsel %vm2014, %v2016, %v2012
        %v2018 = vmul.f32 1.0, %v2017
        %v2019 = vrcp.pop %v1849
        %v2020 = vmul.f32 %v1849, %v2019
        %v2021 = vsub.f32 1.0, %v2020
        %v2022 = vmul.f32 %v2019, %v2021
        %v2023 = vadd.f32 %v2019, %v2022
        %vm2024 = vweird.f32 %v1849
        %vm2025 = vweird.f32 %v2019
        %vm2026 = vmor %vm2024, %vm2025
        %v2027 = vsel %vm2026, %v2019, %v2023
        %v2028 = vand.u32 2147483647, %v1849
        %vm2029 = vcmp.eq.f32.partialorder %v2028, 8.507059e+37
        %v2030 = vand.u32 %v1849, 2147483648
        %v2031 = vor.u32 1.1754944e-38, %v2030
        %v2032 = vsel %vm2029, %v2031, %v2027
        %v2033 = vmul.f32 1.0, %v2032
        %v2034 = vrcp.pop %v1850
        %v2035 = vmul.f32 %v1850, %v2034
        %v2036 = vsub.f32 1.0, %v2035
        %v2037 = vmul.f32 %v2034, %v2036
        %v2038 = vadd.f32 %v2034, %v2037
        %vm2039 = vweird.f32 %v1850
        %vm2040 = vweird.f32 %v2034
        %vm2041 = vmor %vm2039, %vm2040
        %v2042 = vsel %vm2041, %v2034, %v2038
        %v2043 = vand.u32 2147483647, %v1850
        %vm2044 = vcmp.eq.f32.partialorder %v2043, 8.507059e+37
        %v2045 = vand.u32 %v1850, 2147483648
        %v2046 = vor.u32 1.1754944e-38, %v2045
        %v2047 = vsel %vm2044, %v2046, %v2042
        %v2048 = vmul.f32 1.0, %v2047
        %v2049 = vrcp.pop %v1851
        %v2050 = vmul.f32 %v1851, %v2049
        %v2051 = vsub.f32 1.0, %v2050
        %v2052 = vmul.f32 %v2049, %v2051
        %v2053 = vadd.f32 %v2049, %v2052
        %vm2054 = vweird.f32 %v1851
        %vm2055 = vweird.f32 %v2049
        %vm2056 = vmor %vm2054, %vm2055
        %v2057 = vsel %vm2056, %v2049, %v2053
        %v2058 = vand.u32 2147483647, %v1851
        %vm2059 = vcmp.eq.f32.partialorder %v2058, 8.507059e+37
        %v2060 = vand.u32 %v1851, 2147483648
        %v2061 = vor.u32 1.1754944e-38, %v2060
        %v2062 = vsel %vm2059, %v2061, %v2057
        %v2063 = vmul.f32 1.0, %v2062
        %v2064 = vrcp.pop %v1852
        %v2065 = vmul.f32 %v1852, %v2064
        %v2066 = vsub.f32 1.0, %v2065
        %v2067 = vmul.f32 %v2064, %v2066
        %v2068 = vadd.f32 %v2064, %v2067
        %vm2069 = vweird.f32 %v1852
        %vm2070 = vweird.f32 %v2064
        %vm2071 = vmor %vm2069, %vm2070
        %v2072 = vsel %vm2071, %v2064, %v2068
        %v2073 = vand.u32 2147483647, %v1852
        %vm2074 = vcmp.eq.f32.partialorder %v2073, 8.507059e+37
        %v2075 = vand.u32 %v1852, 2147483648
        %v2076 = vor.u32 1.1754944e-38, %v2075
        %v2077 = vsel %vm2074, %v2076, %v2072
        %v2078 = vmul.f32 1.0, %v2077
        %v2079 = vrcp.pop %v1853
        %v2080 = vmul.f32 %v1853, %v2079
        %v2081 = vsub.f32 1.0, %v2080
        %v2082 = vmul.f32 %v2079, %v2081
        %v2083 = vadd.f32 %v2079, %v2082
        %vm2084 = vweird.f32 %v1853
        %vm2085 = vweird.f32 %v2079
        %vm2086 = vmor %vm2084, %vm2085
        %v2087 = vsel %vm2086, %v2079, %v2083
        %v2088 = vand.u32 2147483647, %v1853
        %vm2089 = vcmp.eq.f32.partialorder %v2088, 8.507059e+37
        %v2090 = vand.u32 %v1853, 2147483648
        %v2091 = vor.u32 1.1754944e-38, %v2090
        %v2092 = vsel %vm2089, %v2091, %v2087
        %v2093 = vmul.f32 1.0, %v2092
        %v2094 = vmul.f32 %v1774, %v1868
        %v2095 = vmul.f32 %v1775, %v1883
        %v2096 = vmul.f32 %v1776, %v1898
        %v2097 = vmul.f32 %v1777, %v1913
        %v2098 = vmul.f32 %v1778, %v1928
        %v2099 = vmul.f32 %v1779, %v1943
        %v2100 = vmul.f32 %v1780, %v1958
        %v2101 = vmul.f32 %v1781, %v1973
        %v2102 = vmul.f32 %v1782, %v1988
        %v2103 = vmul.f32 %v1783, %v2003
        %v2104 = vmul.f32 %v1784, %v2018
        %v2105 = vmul.f32 %v1785, %v2033
        %v2106 = vmul.f32 %v1786, %v2048
        %v2107 = vmul.f32 %v1787, %v2063
        %v2108 = vmul.f32 %v1788, %v2078
        %v2109 = vmul.f32 %v1789, %v2093
        %2110 = vmatpush.xpose.msra.mxu0 0.0
        %2111 = vmatpush.xpose.msra.mxu0 0.0
        %2112 = vmatpush.xpose.msra.mxu0 0.0
        %2113 = vmatpush.xpose.msra.mxu0 0.0
        %2114 = vmatpush.xpose.msra.mxu0 0.0
        %2115 = vmatpush.xpose.msra.mxu0 0.0
        %2116 = vmatpush.xpose.msra.mxu0 0.0
        %2117 = vmatpush.xpose.msra.mxu0 0.0
        %2118 = vmatpush.xpose.msra.mxu0 0.0
        %2119 = vmatpush.xpose.msra.mxu0 0.0
        %2120 = vmatpush.xpose.msra.mxu0 0.0
        %2121 = vmatpush.xpose.msra.mxu0 0.0
        %2122 = vmatpush.xpose.msra.mxu0 0.0
        %2123 = vmatpush.xpose.msra.mxu0 0.0
        %2124 = vmatpush.xpose.msra.mxu0 0.0
        %2125 = vmatpush.xpose.msra.mxu0 %v311
        %2126 = vmatmul.f32.gmra.mxu0 %v2094
        %v2127 = vpop.f32.mrf.mxu0
        %v2128 = vadd.f32 0.0, %v2127
        %2129 = vmatmul.f32.gmra.mxu0 %v2098
        %v2130 = vpop.f32.mrf.mxu0
        %v2131 = vadd.f32 0.0, %v2130
        %2132 = vmatmul.f32.gmra.mxu0 %v2102
        %v2133 = vpop.f32.mrf.mxu0
        %v2134 = vadd.f32 0.0, %v2133
        %2135 = vmatmul.f32.gmra.mxu0 %v2106
        %v2136 = vpop.f32.mrf.mxu0
        %v2137 = vadd.f32 0.0, %v2136
        %2138 = vdwg.mxu0
        %2139 = vmatpush.xpose.msra.mxu0 0.0
        %2140 = vmatpush.xpose.msra.mxu0 0.0
        %2141 = vmatpush.xpose.msra.mxu0 0.0
        %2142 = vmatpush.xpose.msra.mxu0 0.0
        %2143 = vmatpush.xpose.msra.mxu0 0.0
        %2144 = vmatpush.xpose.msra.mxu0 0.0
        %2145 = vmatpush.xpose.msra.mxu0 0.0
        %2146 = vmatpush.xpose.msra.mxu0 0.0
        %2147 = vmatpush.xpose.msra.mxu0 0.0
        %2148 = vmatpush.xpose.msra.mxu0 0.0
        %2149 = vmatpush.xpose.msra.mxu0 0.0
        %2150 = vmatpush.xpose.msra.mxu0 0.0
        %2151 = vmatpush.xpose.msra.mxu0 0.0
        %2152 = vmatpush.xpose.msra.mxu0 0.0
        %2153 = vmatpush.xpose.msra.mxu0 0.0
        %2154 = vmatpush.xpose.msra.mxu0 %v312
        %2155 = vmatmul.f32.gmra.mxu0 %v2095
        %v2156 = vpop.f32.mrf.mxu0
        %v2157 = vadd.f32 %v2128, %v2156
        %2158 = vmatmul.f32.gmra.mxu0 %v2099
        %v2159 = vpop.f32.mrf.mxu0
        %v2160 = vadd.f32 %v2131, %v2159
        %2161 = vmatmul.f32.gmra.mxu0 %v2103
        %v2162 = vpop.f32.mrf.mxu0
        %v2163 = vadd.f32 %v2134, %v2162
        %2164 = vmatmul.f32.gmra.mxu0 %v2107
        %v2165 = vpop.f32.mrf.mxu0
        %v2166 = vadd.f32 %v2137, %v2165
        %2167 = vdwg.mxu0
        %2168 = vmatpush.xpose.msra.mxu0 0.0
        %2169 = vmatpush.xpose.msra.mxu0 0.0
        %2170 = vmatpush.xpose.msra.mxu0 0.0
        %2171 = vmatpush.xpose.msra.mxu0 0.0
        %2172 = vmatpush.xpose.msra.mxu0 0.0
        %2173 = vmatpush.xpose.msra.mxu0 0.0
        %2174 = vmatpush.xpose.msra.mxu0 0.0
        %2175 = vmatpush.xpose.msra.mxu0 0.0
        %2176 = vmatpush.xpose.msra.mxu0 0.0
        %2177 = vmatpush.xpose.msra.mxu0 0.0
        %2178 = vmatpush.xpose.msra.mxu0 0.0
        %2179 = vmatpush.xpose.msra.mxu0 0.0
        %2180 = vmatpush.xpose.msra.mxu0 0.0
        %2181 = vmatpush.xpose.msra.mxu0 0.0
        %2182 = vmatpush.xpose.msra.mxu0 0.0
        %2183 = vmatpush.xpose.msra.mxu0 %v313
        %2184 = vmatmul.f32.gmra.mxu0 %v2096
        %v2185 = vpop.f32.mrf.mxu0
        %v2186 = vadd.f32 %v2157, %v2185
        %2187 = vmatmul.f32.gmra.mxu0 %v2100
        %v2188 = vpop.f32.mrf.mxu0
        %v2189 = vadd.f32 %v2160, %v2188
        %2190 = vmatmul.f32.gmra.mxu0 %v2104
        %v2191 = vpop.f32.mrf.mxu0
        %v2192 = vadd.f32 %v2163, %v2191
        %2193 = vmatmul.f32.gmra.mxu0 %v2108
        %v2194 = vpop.f32.mrf.mxu0
        %v2195 = vadd.f32 %v2166, %v2194
        %2196 = vdwg.mxu0
        %2197 = vmatpush.xpose.msra.mxu0 0.0
        %2198 = vmatpush.xpose.msra.mxu0 0.0
        %2199 = vmatpush.xpose.msra.mxu0 0.0
        %2200 = vmatpush.xpose.msra.mxu0 0.0
        %2201 = vmatpush.xpose.msra.mxu0 0.0
        %2202 = vmatpush.xpose.msra.mxu0 0.0
        %2203 = vmatpush.xpose.msra.mxu0 0.0
        %2204 = vmatpush.xpose.msra.mxu0 0.0
        %2205 = vmatpush.xpose.msra.mxu0 0.0
        %2206 = vmatpush.xpose.msra.mxu0 0.0
        %2207 = vmatpush.xpose.msra.mxu0 0.0
        %2208 = vmatpush.xpose.msra.mxu0 0.0
        %2209 = vmatpush.xpose.msra.mxu0 0.0
        %2210 = vmatpush.xpose.msra.mxu0 0.0
        %2211 = vmatpush.xpose.msra.mxu0 0.0
        %2212 = vmatpush.xpose.msra.mxu0 %v314
        %2213 = vmatmul.f32.gmra.mxu0 %v2097
        %v2214 = vpop.f32.mrf.mxu0
        %v2215 = vadd.f32 %v2186, %v2214
        %2216 = vmatmul.f32.gmra.mxu0 %v2101
        %v2217 = vpop.f32.mrf.mxu0
        %v2218 = vadd.f32 %v2189, %v2217
        %2219 = vmatmul.f32.gmra.mxu0 %v2105
        %v2220 = vpop.f32.mrf.mxu0
        %v2221 = vadd.f32 %v2192, %v2220
        %2222 = vmatmul.f32.gmra.mxu0 %v2109
        %v2223 = vpop.f32.mrf.mxu0
        %v2224 = vadd.f32 %v2195, %v2223
        %2225 = vdwg.mxu0
        %v2226 = vld [vmem:[%s3] sm:$0xff]
        %2227 = vset.pattern.permute.xlu0 13
        %2228 = vperm.xlu0 %2227, %v303
        %v2229 = vpop.permute.xlu0 %2228
        %vm2231 = vcmask 261120
        %v2233 = vsel %vm2231, %v2226, 0
        %2235 = vmatpush.msra.mxu0 0.0
        %2236 = vmatpush.msra.mxu0 0.0
        %2237 = vmatpush.msra.mxu0 0.0
        %2238 = vmatpush.msra.mxu0 0.0
        %2239 = vmatpush.msra.mxu0 0.0
        %2240 = vmatpush.msra.mxu0 0.0
        %2241 = vmatpush.msra.mxu0 0.0
        %2242 = vmatpush.msra.mxu0 0.0
        %2243 = vmatpush.msra.mxu0 0.0
        %2244 = vmatpush.msra.mxu0 0.0
        %2245 = vmatpush.msra.mxu0 0.0
        %2246 = vmatpush.msra.mxu0 0.0
        %2247 = vmatpush.msra.mxu0 %v2224
        %2248 = vmatpush.msra.mxu0 %v2221
        %2249 = vmatpush.msra.mxu0 %v2218
        %2250 = vmatpush.msra.mxu0 %v2215
        %2251 = vmatmul.f32.gmra.mxu0 %v2233
        %v2252 = vpop.f32.mrf.mxu0
        %v2253 = vadd.f32 %v2229, %v2252
        %2254 = vdwg.mxu0
        %v2255 = vxor.u32 %v2253, 2147483648
        %v2256 = vmul.f32 %v2255, 1.442695
        %v2257 = vpow.pop %v2256
        %v2258 = vadd.f32 %v2257, 1.0
        %v2259 = vrcp.pop %v2258
        %v2260 = vmul.f32 %v2258, %v2259
        %v2261 = vsub.f32 1.0, %v2260
        %v2262 = vmul.f32 %v2259, %v2261
        %v2263 = vadd.f32 %v2259, %v2262
        %vm2264 = vweird.f32 %v2258
        %vm2265 = vweird.f32 %v2259
        %vm2266 = vmor %vm2264, %vm2265
        %v2267 = vsel %vm2266, %v2259, %v2263
        %v2268 = vand.u32 2147483647, %v2258
        %vm2269 = vcmp.eq.f32.partialorder %v2268, 8.507059e+37
        %v2270 = vand.u32 %v2258, 2147483648
        %v2271 = vor.u32 1.1754944e-38, %v2270
        %v2272 = vsel %vm2269, %v2271, %v2267
        %v2273 = vmul.f32 1.0, %v2272
        %v2274 = vmul.f32 %v2253, %v2273
        %v2275 = vld [vmem:[%s4] sm:$0xff]
        %v2276 = vld [vmem:[%s4 + $0x8] sm:$0xff]
        %v2277 = vld [vmem:[%s4 + $0x10] sm:$0xff]
        %v2278 = vld [vmem:[%s4 + $0x18] sm:$0xff]
        %2279 = vset.pattern.permute.xlu0 11
        %2280 = vperm.xlu0 %2279, %v303
        %v2281 = vpop.permute.xlu0 %2280
        %2283 = vset.pattern.permute.xlu0 11
        %2284 = vperm.xlu0 %2283, %v304
        %v2285 = vpop.permute.xlu0 %2284
        %2287 = vset.pattern.permute.xlu0 11
        %2288 = vperm.xlu0 %2287, %v305
        %v2289 = vpop.permute.xlu0 %2288
        %2291 = vset.pattern.permute.xlu0 11
        %2292 = vperm.xlu0 %2291, %v306
        %v2293 = vpop.permute.xlu0 %2292
        %v2296 = vsel %vm339, %v2275, 0
        %v2299 = vsel %vm339, %v2276, 0
        %v2302 = vsel %vm339, %v2277, 0
        %v2305 = vsel %vm339, %v2278, 0
        %2307 = vmatpush.msra.mxu0 0.0
        %2308 = vmatpush.msra.mxu0 0.0
        %2309 = vmatpush.msra.mxu0 0.0
        %2310 = vmatpush.msra.mxu0 0.0
        %2311 = vmatpush.msra.mxu0 0.0
        %2312 = vmatpush.msra.mxu0 0.0
        %2313 = vmatpush.msra.mxu0 0.0
        %2314 = vmatpush.msra.mxu0 0.0
        %2315 = vmatpush.msra.mxu0 0.0
        %2316 = vmatpush.msra.mxu0 0.0
        %2317 = vmatpush.msra.mxu0 0.0
        %2318 = vmatpush.msra.mxu0 0.0
        %2319 = vmatpush.msra.mxu0 0.0
        %2320 = vmatpush.msra.mxu0 0.0
        %2321 = vmatpush.msra.mxu0 0.0
        %2322 = vmatpush.msra.mxu0 %v2274
        %2323 = vmatmul.f32.gmra.mxu0 %v2296
        %v2324 = vpop.f32.mrf.mxu0
        %v2325 = vadd.f32 %v2281, %v2324
        %2326 = vmatmul.f32.gmra.mxu0 %v2299
        %v2327 = vpop.f32.mrf.mxu0
        %v2328 = vadd.f32 %v2285, %v2327
        %2329 = vmatmul.f32.gmra.mxu0 %v2302
        %v2330 = vpop.f32.mrf.mxu0
        %v2331 = vadd.f32 %v2289, %v2330
        %2332 = vmatmul.f32.gmra.mxu0 %v2305
        %v2333 = vpop.f32.mrf.mxu0
        %v2334 = vadd.f32 %v2293, %v2333
        %2335 = vdwg.mxu0
        %v2336 = vxor.u32 %v2325, 2147483648
        %v2337 = vxor.u32 %v2328, 2147483648
        %v2338 = vxor.u32 %v2331, 2147483648
        %v2339 = vxor.u32 %v2334, 2147483648
        %v2340 = vmul.f32 %v2336, 1.442695
        %v2341 = vpow.pop %v2340
        %v2342 = vmul.f32 %v2337, 1.442695
        %v2343 = vpow.pop %v2342
        %v2344 = vmul.f32 %v2338, 1.442695
        %v2345 = vpow.pop %v2344
        %v2346 = vmul.f32 %v2339, 1.442695
        %v2347 = vpow.pop %v2346
        %v2348 = vadd.f32 %v2341, 1.0
        %v2349 = vadd.f32 %v2343, 1.0
        %v2350 = vadd.f32 %v2345, 1.0
        %v2351 = vadd.f32 %v2347, 1.0
        %v2352 = vrcp.pop %v2348
        %v2353 = vmul.f32 %v2348, %v2352
        %v2354 = vsub.f32 1.0, %v2353
        %v2355 = vmul.f32 %v2352, %v2354
        %v2356 = vadd.f32 %v2352, %v2355
        %vm2357 = vweird.f32 %v2348
        %vm2358 = vweird.f32 %v2352
        %vm2359 = vmor %vm2357, %vm2358
        %v2360 = vsel %vm2359, %v2352, %v2356
        %v2361 = vand.u32 2147483647, %v2348
        %vm2362 = vcmp.eq.f32.partialorder %v2361, 8.507059e+37
        %v2363 = vand.u32 %v2348, 2147483648
        %v2364 = vor.u32 1.1754944e-38, %v2363
        %v2365 = vsel %vm2362, %v2364, %v2360
        %v2366 = vmul.f32 1.0, %v2365
        %v2367 = vrcp.pop %v2349
        %v2368 = vmul.f32 %v2349, %v2367
        %v2369 = vsub.f32 1.0, %v2368
        %v2370 = vmul.f32 %v2367, %v2369
        %v2371 = vadd.f32 %v2367, %v2370
        %vm2372 = vweird.f32 %v2349
        %vm2373 = vweird.f32 %v2367
        %vm2374 = vmor %vm2372, %vm2373
        %v2375 = vsel %vm2374, %v2367, %v2371
        %v2376 = vand.u32 2147483647, %v2349
        %vm2377 = vcmp.eq.f32.partialorder %v2376, 8.507059e+37
        %v2378 = vand.u32 %v2349, 2147483648
        %v2379 = vor.u32 1.1754944e-38, %v2378
        %v2380 = vsel %vm2377, %v2379, %v2375
        %v2381 = vmul.f32 1.0, %v2380
        %v2382 = vrcp.pop %v2350
        %v2383 = vmul.f32 %v2350, %v2382
        %v2384 = vsub.f32 1.0, %v2383
        %v2385 = vmul.f32 %v2382, %v2384
        %v2386 = vadd.f32 %v2382, %v2385
        %vm2387 = vweird.f32 %v2350
        %vm2388 = vweird.f32 %v2382
        %vm2389 = vmor %vm2387, %vm2388
        %v2390 = vsel %vm2389, %v2382, %v2386
        %v2391 = vand.u32 2147483647, %v2350
        %vm2392 = vcmp.eq.f32.partialorder %v2391, 8.507059e+37
        %v2393 = vand.u32 %v2350, 2147483648
        %v2394 = vor.u32 1.1754944e-38, %v2393
        %v2395 = vsel %vm2392, %v2394, %v2390
        %v2396 = vmul.f32 1.0, %v2395
        %v2397 = vrcp.pop %v2351
        %v2398 = vmul.f32 %v2351, %v2397
        %v2399 = vsub.f32 1.0, %v2398
        %v2400 = vmul.f32 %v2397, %v2399
        %v2401 = vadd.f32 %v2397, %v2400
        %vm2402 = vweird.f32 %v2351
        %vm2403 = vweird.f32 %v2397
        %vm2404 = vmor %vm2402, %vm2403
        %v2405 = vsel %vm2404, %v2397, %v2401
        %v2406 = vand.u32 2147483647, %v2351
        %vm2407 = vcmp.eq.f32.partialorder %v2406, 8.507059e+37
        %v2408 = vand.u32 %v2351, 2147483648
        %v2409 = vor.u32 1.1754944e-38, %v2408
        %v2410 = vsel %vm2407, %v2409, %v2405
        %v2411 = vmul.f32 1.0, %v2410
        %2413 = vset.pattern.permute.xlu0 0
        %2414 = vperm.xlu0 %2413, %v2366
        %v2415 = vpop.permute.xlu0 %2414
        %2418 = vset.pattern.permute.xlu0 0
        %2419 = vperm.xlu0 %2418, %v2381
        %v2420 = vpop.permute.xlu0 %2419
        %2423 = vset.pattern.permute.xlu0 0
        %2424 = vperm.xlu0 %2423, %v2396
        %v2425 = vpop.permute.xlu0 %2424
        %2428 = vset.pattern.permute.xlu0 0
        %2429 = vperm.xlu0 %2428, %v2411
        %v2430 = vpop.permute.xlu0 %2429
        %v2432 = vperm.slane %v311, 0
        %v2433 = vperm.slane %v312, 0
        %v2434 = vperm.slane %v313, 0
        %v2435 = vperm.slane %v314, 0
        %v2436 = vmul.f32 %v2415, %v2432
        %v2437 = vmul.f32 %v2415, %v2433
        %v2438 = vmul.f32 %v2415, %v2434
        %v2439 = vmul.f32 %v2415, %v2435
        %v2440 = vmul.f32 %v2420, %v2432
        %v2441 = vmul.f32 %v2420, %v2433
        %v2442 = vmul.f32 %v2420, %v2434
        %v2443 = vmul.f32 %v2420, %v2435
        %v2444 = vmul.f32 %v2425, %v2432
        %v2445 = vmul.f32 %v2425, %v2433
        %v2446 = vmul.f32 %v2425, %v2434
        %v2447 = vmul.f32 %v2425, %v2435
        %v2448 = vmul.f32 %v2430, %v2432
        %v2449 = vmul.f32 %v2430, %v2433
        %v2450 = vmul.f32 %v2430, %v2434
        %v2451 = vmul.f32 %v2430, %v2435
        %2452 = vset.pattern.permute.xlu0 1
        %2453 = vperm.xlu0 %2452, %v2366
        %v2454 = vpop.permute.xlu0 %2453
        %2456 = vset.pattern.permute.xlu0 1
        %2457 = vperm.xlu0 %2456, %v2381
        %v2458 = vpop.permute.xlu0 %2457
        %2460 = vset.pattern.permute.xlu0 1
        %2461 = vperm.xlu0 %2460, %v2396
        %v2462 = vpop.permute.xlu0 %2461
        %2464 = vset.pattern.permute.xlu0 1
        %2465 = vperm.xlu0 %2464, %v2411
        %v2466 = vpop.permute.xlu0 %2465
        %v2468 = vperm.slane %v311, 1
        %v2469 = vperm.slane %v312, 1
        %v2470 = vperm.slane %v313, 1
        %v2471 = vperm.slane %v314, 1
        %v2472 = vmul.f32 %v2454, %v2468
        %v2473 = vmul.f32 %v2454, %v2469
        %v2474 = vmul.f32 %v2454, %v2470
        %v2475 = vmul.f32 %v2454, %v2471
        %v2476 = vmul.f32 %v2458, %v2468
        %v2477 = vmul.f32 %v2458, %v2469
        %v2478 = vmul.f32 %v2458, %v2470
        %v2479 = vmul.f32 %v2458, %v2471
        %v2480 = vmul.f32 %v2462, %v2468
        %v2481 = vmul.f32 %v2462, %v2469
        %v2482 = vmul.f32 %v2462, %v2470
        %v2483 = vmul.f32 %v2462, %v2471
        %v2484 = vmul.f32 %v2466, %v2468
        %v2485 = vmul.f32 %v2466, %v2469
        %v2486 = vmul.f32 %v2466, %v2470
        %v2487 = vmul.f32 %v2466, %v2471
        %v2488 = vadd.f32 %v2436, %v2472
        %v2489 = vadd.f32 %v2437, %v2473
        %v2490 = vadd.f32 %v2438, %v2474
        %v2491 = vadd.f32 %v2439, %v2475
        %v2492 = vadd.f32 %v2440, %v2476
        %v2493 = vadd.f32 %v2441, %v2477
        %v2494 = vadd.f32 %v2442, %v2478
        %v2495 = vadd.f32 %v2443, %v2479
        %v2496 = vadd.f32 %v2444, %v2480
        %v2497 = vadd.f32 %v2445, %v2481
        %v2498 = vadd.f32 %v2446, %v2482
        %v2499 = vadd.f32 %v2447, %v2483
        %v2500 = vadd.f32 %v2448, %v2484
        %v2501 = vadd.f32 %v2449, %v2485
        %v2502 = vadd.f32 %v2450, %v2486
        %v2503 = vadd.f32 %v2451, %v2487
        %v2504 = vmul.f32 %v2094, %v2488
        %v2505 = vmul.f32 %v2095, %v2489
        %v2506 = vmul.f32 %v2096, %v2490
        %v2507 = vmul.f32 %v2097, %v2491
        %v2508 = vmul.f32 %v2098, %v2492
        %v2509 = vmul.f32 %v2099, %v2493
        %v2510 = vmul.f32 %v2100, %v2494
        %v2511 = vmul.f32 %v2101, %v2495
        %v2512 = vmul.f32 %v2102, %v2496
        %v2513 = vmul.f32 %v2103, %v2497
        %v2514 = vmul.f32 %v2104, %v2498
        %v2515 = vmul.f32 %v2105, %v2499
        %v2516 = vmul.f32 %v2106, %v2500
        %v2517 = vmul.f32 %v2107, %v2501
        %v2518 = vmul.f32 %v2108, %v2502
        %v2519 = vmul.f32 %v2109, %v2503
        %v2520 = vld [vmem:[%s2] sm:$0xff]
        %2521 = vset.pattern.permute.xlu0 12
        %2522 = vperm.xlu0 %2521, %v303
        %v2523 = vpop.permute.xlu0 %2522
        %v2526 = vsel %vm2231, %v2520, 0
        %2528 = vmatpush.msra.mxu0 0.0
        %2529 = vmatpush.msra.mxu0 0.0
        %2530 = vmatpush.msra.mxu0 0.0
        %2531 = vmatpush.msra.mxu0 0.0
        %2532 = vmatpush.msra.mxu0 0.0
        %2533 = vmatpush.msra.mxu0 0.0
        %2534 = vmatpush.msra.mxu0 0.0
        %2535 = vmatpush.msra.mxu0 0.0
        %2536 = vmatpush.msra.mxu0 0.0
        %2537 = vmatpush.msra.mxu0 0.0
        %2538 = vmatpush.msra.mxu0 0.0
        %2539 = vmatpush.msra.mxu0 0.0
        %2540 = vmatpush.msra.mxu0 %v2516
        %2541 = vmatpush.msra.mxu0 %v2512
        %2542 = vmatpush.msra.mxu0 %v2508
        %2543 = vmatpush.msra.mxu0 %v2504
        %2544 = vmatmul.f32.gmra.mxu0 %v2526
        %v2545 = vpop.f32.mrf.mxu0
        %v2546 = vadd.f32 %v2523, %v2545
        %2547 = vdwg.mxu0
        %2548 = vmatpush.msra.mxu0 0.0
        %2549 = vmatpush.msra.mxu0 0.0
        %2550 = vmatpush.msra.mxu0 0.0
        %2551 = vmatpush.msra.mxu0 0.0
        %2552 = vmatpush.msra.mxu0 0.0
        %2553 = vmatpush.msra.mxu0 0.0
        %2554 = vmatpush.msra.mxu0 0.0
        %2555 = vmatpush.msra.mxu0 0.0
        %2556 = vmatpush.msra.mxu0 0.0
        %2557 = vmatpush.msra.mxu0 0.0
        %2558 = vmatpush.msra.mxu0 0.0
        %2559 = vmatpush.msra.mxu0 0.0
        %2560 = vmatpush.msra.mxu0 %v2517
        %2561 = vmatpush.msra.mxu0 %v2513
        %2562 = vmatpush.msra.mxu0 %v2509
        %2563 = vmatpush.msra.mxu0 %v2505
        %2564 = vmatmul.f32.gmra.mxu0 %v2526
        %v2565 = vpop.f32.mrf.mxu0
        %v2566 = vadd.f32 %v2523, %v2565
        %2567 = vdwg.mxu0
        %2568 = vmatpush.msra.mxu0 0.0
        %2569 = vmatpush.msra.mxu0 0.0
        %2570 = vmatpush.msra.mxu0 0.0
        %2571 = vmatpush.msra.mxu0 0.0
        %2572 = vmatpush.msra.mxu0 0.0
        %2573 = vmatpush.msra.mxu0 0.0
        %2574 = vmatpush.msra.mxu0 0.0
        %2575 = vmatpush.msra.mxu0 0.0
        %2576 = vmatpush.msra.mxu0 0.0
        %2577 = vmatpush.msra.mxu0 0.0
        %2578 = vmatpush.msra.mxu0 0.0
        %2579 = vmatpush.msra.mxu0 0.0
        %2580 = vmatpush.msra.mxu0 %v2518
        %2581 = vmatpush.msra.mxu0 %v2514
        %2582 = vmatpush.msra.mxu0 %v2510
        %2583 = vmatpush.msra.mxu0 %v2506
        %2584 = vmatmul.f32.gmra.mxu0 %v2526
        %v2585 = vpop.f32.mrf.mxu0
        %v2586 = vadd.f32 %v2523, %v2585
        %2587 = vdwg.mxu0
        %2588 = vmatpush.msra.mxu0 0.0
        %2589 = vmatpush.msra.mxu0 0.0
        %2590 = vmatpush.msra.mxu0 0.0
        %2591 = vmatpush.msra.mxu0 0.0
        %2592 = vmatpush.msra.mxu0 0.0
        %2593 = vmatpush.msra.mxu0 0.0
        %2594 = vmatpush.msra.mxu0 0.0
        %2595 = vmatpush.msra.mxu0 0.0
        %2596 = vmatpush.msra.mxu0 0.0
        %2597 = vmatpush.msra.mxu0 0.0
        %2598 = vmatpush.msra.mxu0 0.0
        %2599 = vmatpush.msra.mxu0 0.0
        %2600 = vmatpush.msra.mxu0 %v2519
        %2601 = vmatpush.msra.mxu0 %v2515
        %2602 = vmatpush.msra.mxu0 %v2511
        %2603 = vmatpush.msra.mxu0 %v2507
        %2604 = vmatmul.f32.gmra.mxu0 %v2526
        %v2605 = vpop.f32.mrf.mxu0
        %v2606 = vadd.f32 %v2523, %v2605
        %2607 = vdwg.mxu0
        %v2608 = vadd.f32 %v2546, %v299
        %v2609 = vadd.f32 %v2566, %v300
        %v2610 = vadd.f32 %v2586, %v301
        %v2611 = vadd.f32 %v2606, %v302
        %2612 = vst [vmem:[%s296] sm:$0xff] %v2608
        %2613 = vst [vmem:[%s296 + $0x8] sm:$0xff] %v2609
        %2614 = vst [vmem:[%s296 + $0x10] sm:$0xff] %v2610
        %2615 = vst [vmem:[%s296 + $0x18] sm:$0xff] %v2611
        %s2616 = sand.u32 %s184, 1
        %s2617 = scalar_lea.sflag [#allocation4], %s2616
        %s2618 = sand.u32 %s184, 1
        %s2619 = smul.addr %s2618, 32
        %s2620 = scalar_lea.vmem [#allocation5], %s2619
        // Predicated region
        $region53: #{tpu_custom_call.1} parent=47 // pred_check
          %p2621 = pneg %p194
        $region54: #{tpu_custom_call.1} parent=47 // pred_check_branch
          %2623 = sbr.rel (%p2621) target = $region56
        $region55: #{tpu_custom_call.1} parent=47 // pred_region
          %s2624 = smul.u32 4, %s24
          %2626 = vsyncadd %s2617, 0
          %s2627 = smul.addr %s2624, 8
          %s2628 = scalar_lea.hbm %s7, %s2627
          %s2630 = sshll.u32 %s2620, 4
          %s2631 = int_to_ptr.vmem [resolvable:$true] %s2630
          %s2632 = sshll.u32 %s2628, 4
          %s2633 = int_to_ptr.hbm [resolvable:$true] %s2632
          %2635 = dma.vmem_to_hbm [thread:$0]  %s2631, 512, %s2633, %s2617
        $region56: #{tpu_custom_call.1} parent=47 // pred_fallthru
          _
      $region48: #{tpu_custom_call.1} parent=5 // pred_fallthru
        _
      %p2636 = scmp.le.s32.totalorder 2, %s19
      // Predicated region
      $region57: #{tpu_custom_call.1} parent=5 // pred_check
        %p2637 = pneg %p2636
      $region58: #{tpu_custom_call.1} parent=5 // pred_check_branch
        %2639 = sbr.rel (%p2637) target = $region60
      $region59: #{tpu_custom_call.1} parent=5 // pred_region
        %s2640 = ssub.s32 %s19, 2
        // Predicated region
        $region61: #{tpu_custom_call.1} parent=59 // pred_check
          %p2641 = pneg %p200
        $region62: #{tpu_custom_call.1} parent=59 // pred_check_branch
          %2643 = sbr.rel (%p2641) target = $region64
        $region63: #{tpu_custom_call.1} parent=59 // pred_region
          %s2644 = sand.u32 %s185, 1
          %s2645 = scalar_lea.sflag [#allocation4], %s2644
          %s2646 = sand.u32 %s185, 1
          %s2647 = smul.addr %s2646, 32
          %s2648 = scalar_lea.vmem [#allocation5], %s2647
          %2650 = dma.done %s2645, 512
        $region64: #{tpu_custom_call.1} parent=59 // pred_fallthru
          _
      $region60: #{tpu_custom_call.1} parent=5 // pred_fallthru
        _
    $region6: #{tpu_custom_call.1} parent=1 // loop_footer
      %s23 = sadd.s32 1, %s19
    $region7: #{tpu_custom_call.1} parent=1 // loop_footer_branch
      %18 = sbr.rel target = $region3
    $region8: #{tpu_custom_call.1} parent=1 // loop_exit
      _
    %2651 = vsyncpa [#allocation3], 1
    %s2652 = scalar_lea.sflag [#allocation3], 1
    %2653 = vsyncpa %s2652, 1
    %2654 = vsyncpa [#allocation4], 1
    %s2655 = scalar_lea.sflag [#allocation4], 1
    %2656 = vsyncpa %s2655, 1

</llo_original>
